<compile_context>
chip_gen: v7x
topology: tpu7x:2x2x1
jax: 0.10.0
libtpu: 0.0.40
codegen_flags: <defaults>
</compile_context>

<pallas_src>
import numpy as np
import jax
import jax.numpy as jnp
from jax.experimental import pallas as pl
from jax.experimental.pallas import tpu as pltpu


# ----------------------- Morlet wavelet (pycwt-style, f0 = 6) -----------------------
_F0 = 6.0


def _morlet_psi_ft(f):
    return (np.pi ** -0.25) * np.exp(-0.5 * (f - _F0) ** 2)


def _morlet_flambda():
    return (4.0 * np.pi) / (_F0 + np.sqrt(2.0 + _F0 ** 2))


def build_cwt_matrices(n0: int, dt: float = 1.0, dj: float = 1.0 / 12.0):
    """Replicates Cwt._get_params / _get_psi_ft_bar (Morlet) and folds the whole
    linear chain  DFT . diag(psi_s) . IDFT  into two real (N, N*S) matrices.

    Column order is n-major (col = n*S + s), so mag @ blockdiag(W) lands directly
    in (B, N*D) layout with no transposes or reshapes inside the kernel.
    """
    flambda = _morlet_flambda()
    s0 = 2.0 * dt / flambda
    J = int(np.round(np.log2(n0 * dt / s0) / dj))
    sj = s0 * 2.0 ** (np.arange(0, J + 1) * dj)           # (S,)
    N = n0                                                # n0 is a power of two -> pow2pad is identity
    ftfreqs = 2.0 * np.pi * np.fft.fftfreq(N, dt)         # (N,)
    sj_col = sj[:, None]
    psi = (sj_col * ftfreqs[1] * N) ** 0.5 * np.conjugate(_morlet_psi_ft(sj_col * ftfreqs))
    # psi_ft is real for Morlet; torch's `.type_as(x)` with real x also drops the imag part.
    psi = np.real(psi).astype(np.float64)                 # (S, N)
    S = psi.shape[0]

    k = np.arange(N)
    Fc = np.exp(-2j * np.pi * np.outer(k, k) / N)         # DFT:   X = x @ Fc
    IFc = np.exp(+2j * np.pi * np.outer(k, k) / N) / N    # IDFT:  y = Z @ IFc
    # M[n_in, n_out, s] = sum_k Fc[n_in, k] * psi[s, k] * IFc[k, n_out]
    Mc = np.einsum('nk,sk,km->nms', Fc, psi, IFc)         # (N, N, S) complex (exact FFT fold)
    M_re = np.real(Mc).reshape(N, N * S).astype(np.float32)
    M_im = np.imag(Mc).reshape(N, N * S).astype(np.float32)
    return psi.astype(np.float32), M_re, M_im


# --------------------------------- Pallas kernel ------------------------------------
def cwt_adapter_kernel(x_ref, m_re_ref, m_im_ref, w_ref, b_ref, out_ref):
    x = x_ref[...]                                                          # (B, N)
    # Folded FFT * psi * IFFT -> one matmul pair over the full batch.
    y_re = jnp.dot(x, m_re_ref[...], preferred_element_type=jnp.float32)    # (B, N*S)
    y_im = jnp.dot(x, m_im_ref[...], preferred_element_type=jnp.float32)    # (B, N*S)
    mag = jnp.sqrt(y_re * y_re + y_im * y_im)                               # (B, N*S)
    # Block-diagonal adapter: (B, N*S) @ (N*S, N*D) -> lane-dense (B, N*D) output.
    out = jnp.dot(mag, w_ref[...], preferred_element_type=jnp.float32)      # (B, N*D)
    out_ref[...] = (out + b_ref[...]).astype(out_ref.dtype)


def cwt_with_adapter(x, M_re, M_im, W_big, bias_big, n0, d_model):
    B, N = x.shape
    NS = M_re.shape[1]
    ND = n0 * d_model
    vmem = pl.BlockSpec(memory_space=pltpu.MemorySpace.VMEM)
    flops = 2 * B * N * NS * 2 + 2 * B * NS * ND
    bytes_accessed = 4 * (x.size + M_re.size + M_im.size + W_big.size
                          + bias_big.size + B * ND)
    out_flat = pl.pallas_call(
        cwt_adapter_kernel,
        out_shape=jax.ShapeDtypeStruct((B, ND), jnp.float32),
        in_specs=[vmem] * 5,
        out_specs=vmem,
        cost_estimate=pl.CostEstimate(flops=flops,
                                      transcendentals=B * NS,
                                      bytes_accessed=bytes_accessed),
    )(x, M_re, M_im, W_big, bias_big)
    return out_flat.reshape(B, n0, d_model)


# --------------------------------- reference (plain JAX) ----------------------------
def reference(x, psi, W, bias):
    x_ft = jnp.fft.fft(x.astype(jnp.complex64), axis=-1)[:, None, :]   # (B, 1, N)
    y = jnp.fft.ifft(x_ft * psi[None].astype(jnp.complex64), axis=-1)  # (B, S, N)
    mag = jnp.abs(y).transpose(0, 2, 1)                                # (B, N, S)
    return mag @ W + bias[None, None, :]                               # (B, N, D)


if __name__ == "__main__":
    n0 = 16          # power of two (time length)
    B = 2
    d_model = 32
    dt = 1.0
    dj = 1.0 / 12.0

    # TODO(synk): the folded matrices grow as O(N^2 * S); for large n0 switch to a
    # gridded BlockSpec over scales/time instead of the fully-resident layout.
    psi_np, M_re_np, M_im_np = build_cwt_matrices(n0, dt, dj)
    n_scales = psi_np.shape[0]  # = J + 1 (== 38 for n0=16, dt=1, dj=1/12, Morlet)

    key = jax.random.PRNGKey(0)
    kx, kw, kb = jax.random.split(key, 3)
    x = jax.random.normal(kx, (B, n0), dtype=jnp.float32)
    # synthetic adapter params (torch Linear: weight (d_model, n_scales)); W = weight.T
    W = (jax.random.normal(kw, (n_scales, d_model), dtype=jnp.float32)
         * (1.0 / np.sqrt(n_scales)))
    bias = jax.random.normal(kb, (d_model,), dtype=jnp.float32) * 0.01

    M_re = jnp.asarray(M_re_np)
    M_im = jnp.asarray(M_im_np)

    # Block-diagonal adapter weight: W_big[n*S + s, n*D + d] = W[s, d]
    W_big = jnp.einsum('nm,sd->nsmd',
                       jnp.eye(n0, dtype=jnp.float32), W).reshape(n0 * n_scales,
                                                                  n0 * d_model)
    # Bias tiled once on the host (hoisted broadcast): [0, n*D + d] = bias[d]
    bias_big = jnp.tile(bias, n0).reshape(1, n0 * d_model)

    out = cwt_with_adapter(x, M_re, M_im, W_big, bias_big, n0, d_model)
    out = jax.block_until_ready(out)

    ref = jax.block_until_ready(reference(x, jnp.asarray(psi_np), W, bias))
    err = float(jnp.max(jnp.abs(out - ref)))
    scale = float(jnp.max(jnp.abs(ref))) + 1e-6
    assert out.shape == (B, n0, d_model), out.shape
    assert err / scale < 2e-2, f"mismatch: max abs err {err} (scale {scale})"

    print("KERNEL_OK")
</pallas_src>

<mosaic_0001>
module attributes {stable_mosaic.version = 11 : i64} {
  func.func @cwt_adapter_kernel(%arg0: memref<2x16xf32, #tpu.memory_space<vmem>>, %arg1: memref<16x608xf32, #tpu.memory_space<vmem>>, %arg2: memref<16x608xf32, #tpu.memory_space<vmem>>, %arg3: memref<608x512xf32, #tpu.memory_space<vmem>>, %arg4: memref<1x512xf32, #tpu.memory_space<vmem>>, %arg5: memref<2x512xf32, #tpu.memory_space<vmem>>) attributes {dimension_semantics = [], scalar_prefetch = 0 : i64, scratch_operands = 0 : i64, tpu.core_type = #tpu.core_type<tc>} {
    %c0 = arith.constant 0 : index
    %c0_0 = arith.constant 0 : index
    %0 = vector.load %arg0[%c0, %c0_0] : memref<2x16xf32, #tpu.memory_space<vmem>>, vector<2x16xf32>
    %c0_1 = arith.constant 0 : index
    %c0_2 = arith.constant 0 : index
    %1 = vector.load %arg1[%c0_1, %c0_2] : memref<16x608xf32, #tpu.memory_space<vmem>>, vector<16x608xf32>
    %cst = arith.constant dense<0.000000e+00> : vector<2x608xf32>
    %2 = tpu.matmul %0, %1, %cst {dimension_numbers = #tpu.dot_dimension_numbers<[1], [0], [0], [1], [0, 0, 1, 1], [], []>} : vector<2x16xf32>, vector<16x608xf32>, vector<2x608xf32> -> vector<2x608xf32>
    %c0_3 = arith.constant 0 : index
    %c0_4 = arith.constant 0 : index
    %3 = vector.load %arg2[%c0_3, %c0_4] : memref<16x608xf32, #tpu.memory_space<vmem>>, vector<16x608xf32>
    %cst_5 = arith.constant dense<0.000000e+00> : vector<2x608xf32>
    %4 = tpu.matmul %0, %3, %cst_5 {dimension_numbers = #tpu.dot_dimension_numbers<[1], [0], [0], [1], [0, 0, 1, 1], [], []>} : vector<2x16xf32>, vector<16x608xf32>, vector<2x608xf32> -> vector<2x608xf32>
    %5 = arith.mulf %2, %2 : vector<2x608xf32>
    %6 = arith.mulf %4, %4 : vector<2x608xf32>
    %7 = arith.addf %5, %6 : vector<2x608xf32>
    %8 = math.sqrt %7 : vector<2x608xf32>
    %c0_6 = arith.constant 0 : index
    %c0_7 = arith.constant 0 : index
    %9 = vector.load %arg3[%c0_6, %c0_7] : memref<608x512xf32, #tpu.memory_space<vmem>>, vector<608x512xf32>
    %cst_8 = arith.constant dense<0.000000e+00> : vector<2x512xf32>
    %10 = tpu.matmul %8, %9, %cst_8 {dimension_numbers = #tpu.dot_dimension_numbers<[1], [0], [0], [1], [0, 0, 1, 1], [], []>} : vector<2x608xf32>, vector<608x512xf32>, vector<2x512xf32> -> vector<2x512xf32>
    %c0_9 = arith.constant 0 : index
    %c0_10 = arith.constant 0 : index
    %11 = vector.load %arg4[%c0_9, %c0_10] : memref<1x512xf32, #tpu.memory_space<vmem>>, vector<1x512xf32>
    %12 = vector.broadcast %11 : vector<1x512xf32> to vector<2x512xf32>
    %13 = arith.addf %10, %12 : vector<2x512xf32>
    %c0_11 = arith.constant 0 : index
    %c0_12 = arith.constant 0 : index
    %14 = vector.load %arg5[%c0_11, %c0_12] : memref<2x512xf32, #tpu.memory_space<vmem>>, vector<2x512xf32>
    tpu.vector_store %arg5[%c0_11, %c0_12], %13 {strides = array<i32>} : memref<2x512xf32, #tpu.memory_space<vmem>>, vector<2x512xf32>,
    return
  }
}

</mosaic_0001>

<llo_original>
// kernel: tpu_custom_call.1
$region0: #{tpu_custom_call.1}
  #allocation0 [shape = 'u32[]', space=smem, size = 0x4, offset = 0x4, fixed_abs, tag = 'smem constant byte address 0x4 - core index']
  #allocation1 [shape = 'u32[144,128]{1,0:T(1,128)}', space=vmem, size = 0x12000, scoped, tag = 'internal scratch']
  %s0 = inlined_call_operand.hbm [shape: f32[2,16], index: 0, kind: input, shape index: {}]
  %s1 = inlined_call_operand.hbm [shape: f32[16,608], index: 1, kind: input, shape index: {}]
  %s2 = inlined_call_operand.hbm [shape: f32[16,608], index: 2, kind: input, shape index: {}]
  %s3 = inlined_call_operand.hbm [shape: f32[608,512], index: 3, kind: input, shape index: {}]
  %s4 = inlined_call_operand.hbm [shape: f32[1,512], index: 4, kind: input, shape index: {}]
  %s5 = inlined_call_operand.hbm [shape: f32[2,512], index: 5, kind: output, shape index: {}]
  %s6 = sld [smem:[#allocation0]]
  $region50: #{tpu_custom_call.1} parent=0
    _
  %s8 = ssub.s32 1, %s6
  %s9 = scalar_select 0, %s8, %s6
  $region1: #{tpu_custom_call.1} parent=0
    #allocation2 [shape = 'u8[1024]{0}', space=vmem, size = 0x400, scoped, tag = 'input window, operand 0, single buffered']
    #allocation3 [shape = 's32[1]{0}', space=sflag, size = 0x4, scoped, tag = 'scoped memory for tpu_custom_call.1']
    #allocation4 [shape = 's32[1]{0}', space=sflag, size = 0x4, scoped, tag = 'scoped memory for tpu_custom_call.1']
    #allocation5 [shape = 'u8[40960]{0}', space=vmem, size = 0xa000, scoped, tag = 'input window, operand 1, single buffered']
    #allocation6 [shape = 's32[1]{0}', space=sflag, size = 0x4, scoped, tag = 'scoped memory for tpu_custom_call.1']
    #allocation7 [shape = 'u8[40960]{0}', space=vmem, size = 0xa000, scoped, tag = 'input window, operand 2, single buffered']
    #allocation8 [shape = 'u8[1245184]{0}', space=vmem, size = 0x130000, scoped, tag = 'input window, operand 3, single buffered']
    #allocation9 [shape = 's32[1]{0}', space=sflag, size = 0x4, scoped, tag = 'scoped memory for tpu_custom_call.1']
    #allocation10 [shape = 'u8[2048]{0}', space=vmem, size = 0x800, scoped, tag = 'input window, operand 4, single buffered']
    #allocation11 [shape = 'u8[4096]{0}', space=vmem, size = 0x1000, scoped, tag = 'output window, operand 0, single buffered']
    %10 = vsyncpa [#allocation3], 0
    %11 = vsyncpa [#allocation6], 0
    %12 = vsyncpa [#allocation9], 0
    %13 = vsyncpa [#allocation4], 0
    // Predicated region
    $region2: #{tpu_custom_call.1} parent=1 // pred_check
      _
    $region3: #{tpu_custom_call.1} parent=1 // pred_check_branch
      %15 = sbr.rel (0) target = $region5
    $region4: #{tpu_custom_call.1} parent=1 // pred_region
      %s17 = ssub.s32 32, 32
      %18 = vsyncadd [#allocation3], %s17
      %s20 = sshll.u32 [#allocation2], 4
      %s21 = int_to_ptr.vmem [resolvable:$true] %s20
      %23 = dma.hbm_to_vmem [thread:$0]  %s0, 32, %s21, [#allocation3]
    $region5: #{tpu_custom_call.1} parent=1 // pred_fallthru
      _
    // Predicated region
    $region6: #{tpu_custom_call.1} parent=1 // pred_check
      _
    $region7: #{tpu_custom_call.1} parent=1 // pred_check_branch
      %25 = sbr.rel (0) target = $region9
    $region8: #{tpu_custom_call.1} parent=1 // pred_region
      %s27 = ssub.s32 1280, 1280
      %28 = vsyncadd [#allocation6], %s27
      %s29 = sshll.u32 [#allocation5], 4
      %s30 = int_to_ptr.vmem [resolvable:$true] %s29
      %35 = dma.hbm_to_vmem [thread:$0]  %s1, 1280, %s30, [#allocation6], 640, 640, 40
    $region9: #{tpu_custom_call.1} parent=1 // pred_fallthru
      _
    // Predicated region
    $region10: #{tpu_custom_call.1} parent=1 // pred_check
      _
    $region11: #{tpu_custom_call.1} parent=1 // pred_check_branch
      %37 = sbr.rel (0) target = $region13
    $region12: #{tpu_custom_call.1} parent=1 // pred_region
      %s39 = ssub.s32 1280, 1280
      %40 = vsyncadd [#allocation6], %s39
      %s41 = sshll.u32 [#allocation7], 4
      %s42 = int_to_ptr.vmem [resolvable:$true] %s41
      %47 = dma.hbm_to_vmem [thread:$0]  %s2, 1280, %s42, [#allocation6], 640, 640, 40
    $region13: #{tpu_custom_call.1} parent=1 // pred_fallthru
      _
    // Predicated region
    $region14: #{tpu_custom_call.1} parent=1 // pred_check
      _
    $region15: #{tpu_custom_call.1} parent=1 // pred_check_branch
      %49 = sbr.rel (0) target = $region17
    $region16: #{tpu_custom_call.1} parent=1 // pred_region
      %s51 = ssub.s32 38912, 38912
      %52 = vsyncadd [#allocation9], %s51
      %s53 = sshll.u32 [#allocation8], 4
      %s54 = int_to_ptr.vmem [resolvable:$true] %s53
      %59 = dma.hbm_to_vmem [thread:$0]  %s3, 38912, %s54, [#allocation9], 512, 512, 32
    $region17: #{tpu_custom_call.1} parent=1 // pred_fallthru
      _
    // Predicated region
    $region18: #{tpu_custom_call.1} parent=1 // pred_check
      _
    $region19: #{tpu_custom_call.1} parent=1 // pred_check_branch
      %61 = sbr.rel (0) target = $region21
    $region20: #{tpu_custom_call.1} parent=1 // pred_region
      %s63 = ssub.s32 64, 64
      %64 = vsyncadd [#allocation9], %s63
      %s66 = sshll.u32 [#allocation10], 4
      %s67 = int_to_ptr.vmem [resolvable:$true] %s66
      %69 = dma.hbm_to_vmem [thread:$0]  %s4, 64, %s67, [#allocation9]
    $region21: #{tpu_custom_call.1} parent=1 // pred_fallthru
      _
    // Predicated region
    $region22: #{tpu_custom_call.1} parent=1 // pred_check
      _
    $region23: #{tpu_custom_call.1} parent=1 // pred_check_branch
      %71 = sbr.rel (0) target = $region25
    $region24: #{tpu_custom_call.1} parent=1 // pred_region
      %72 = dma.done [#allocation3], 32
    $region25: #{tpu_custom_call.1} parent=1 // pred_fallthru
      _
    // Predicated region
    $region26: #{tpu_custom_call.1} parent=1 // pred_check
      _
    $region27: #{tpu_custom_call.1} parent=1 // pred_check_branch
      %74 = sbr.rel (0) target = $region29
    $region28: #{tpu_custom_call.1} parent=1 // pred_region
      %75 = dma.done [#allocation6], 1280
    $region29: #{tpu_custom_call.1} parent=1 // pred_fallthru
      _
    // Predicated region
    $region30: #{tpu_custom_call.1} parent=1 // pred_check
      _
    $region31: #{tpu_custom_call.1} parent=1 // pred_check_branch
      %77 = sbr.rel (0) target = $region33
    $region32: #{tpu_custom_call.1} parent=1 // pred_region
      %78 = dma.done [#allocation6], 1280
    $region33: #{tpu_custom_call.1} parent=1 // pred_fallthru
      _
    // Predicated region
    $region34: #{tpu_custom_call.1} parent=1 // pred_check
      _
    $region35: #{tpu_custom_call.1} parent=1 // pred_check_branch
      %80 = sbr.rel (0) target = $region37
    $region36: #{tpu_custom_call.1} parent=1 // pred_region
      %81 = dma.done [#allocation9], 38912
    $region37: #{tpu_custom_call.1} parent=1 // pred_fallthru
      _
    // Predicated region
    $region38: #{tpu_custom_call.1} parent=1 // pred_check
      _
    $region39: #{tpu_custom_call.1} parent=1 // pred_check_branch
      %83 = sbr.rel (0) target = $region41
    $region40: #{tpu_custom_call.1} parent=1 // pred_region
      %84 = dma.done [#allocation9], 64
    $region41: #{tpu_custom_call.1} parent=1 // pred_fallthru
      _
    %v85 = vld [vmem:[#allocation2] sm:$0x3]
    %v86 = vld [vmem:[#allocation5] sm:$0xff]
    %v87 = vld [vmem:[#allocation5 + $0x8] sm:$0xff]
    %v88 = vld [vmem:[#allocation5 + $0x10] sm:$0xff]
    %v89 = vld [vmem:[#allocation5 + $0x18] sm:$0xff]
    %v90 = vld [vmem:[#allocation5 + $0x20] sm:$0xff]
    %v91 = vld [vmem:[#allocation5 + $0x28] sm:$0xff]
    %v92 = vld [vmem:[#allocation5 + $0x30] sm:$0xff]
    %v93 = vld [vmem:[#allocation5 + $0x38] sm:$0xff]
    %v94 = vld [vmem:[#allocation5 + $0x40] sm:$0xff]
    %v95 = vld [vmem:[#allocation5 + $0x48] sm:$0xff]
    %vm96 = vcmask 130048
    %v98 = vsel %vm96, %v85, 0
    %100 = vmatprep.subr.mxu0 %v87
    %101 = vmatpush1.msra.mxu0 %v86
    %102 = vmatprep.subr.mxu0 %v92
    %103 = vmatpush1.msra.mxu0 %v91
    %104 = vmatprep.subr.mxu0 0.0
    %105 = vmatpush1.msra.mxu0 0.0
    %106 = vmatprep.subr.mxu0 0.0
    %107 = vmatpush1.msra.mxu0 0.0
    %108 = vmatprep.subr.mxu0 0.0
    %109 = vmatpush1.msra.mxu0 0.0
    %110 = vmatprep.subr.mxu0 0.0
    %111 = vmatpush1.msra.mxu0 0.0
    %112 = vmatprep.subr.mxu0 0.0
    %113 = vmatpush1.msra.mxu0 0.0
    %114 = vmatprep.subr.mxu0 0.0
    %115 = vmatpush1.msra.mxu0 0.0
    %116 = vmatprep.subr.mxu0 0.0
    %117 = vmatpush1.msra.mxu0 0.0
    %118 = vmatprep.subr.mxu0 0.0
    %119 = vmatpush1.msra.mxu0 0.0
    %120 = vmatprep.subr.mxu0 0.0
    %121 = vmatpush1.msra.mxu0 0.0
    %122 = vmatprep.subr.mxu0 0.0
    %123 = vmatpush1.msra.mxu0 0.0
    %124 = vmatprep.subr.mxu0 0.0
    %125 = vmatpush1.msra.mxu0 0.0
    %126 = vmatprep.subr.mxu0 0.0
    %127 = vmatpush1.msra.mxu0 0.0
    %128 = vmatprep.subr.mxu0 0.0
    %129 = vmatpush1.msra.mxu0 0.0
    %130 = vmatprep.subr.mxu0 0.0
    %131 = vmatpush1.msra.mxu0 0.0
    %132 = vmatprep.subr.mxu0 0.0
    %133 = vmatpush1.msra.mxu0 0.0
    %134 = vmatprep.subr.mxu0 0.0
    %135 = vmatpush1.msra.mxu0 0.0
    %136 = vmatprep.subr.mxu0 0.0
    %137 = vmatpush1.msra.mxu0 0.0
    %138 = vmatprep.subr.mxu0 0.0
    %139 = vmatpush1.msra.mxu0 0.0
    %140 = vmatprep.subr.mxu0 0.0
    %141 = vmatpush1.msra.mxu0 0.0
    %142 = vmatprep.subr.mxu0 0.0
    %143 = vmatpush1.msra.mxu0 0.0
    %144 = vmatprep.subr.mxu0 0.0
    %145 = vmatpush1.msra.mxu0 0.0
    %146 = vmatprep.subr.mxu0 0.0
    %147 = vmatpush1.msra.mxu0 0.0
    %148 = vmatprep.subr.mxu0 0.0
    %149 = vmatpush1.msra.mxu0 0.0
    %150 = vmatprep.subr.mxu0 0.0
    %151 = vmatpush1.msra.mxu0 0.0
    %152 = vmatprep.subr.mxu0 0.0
    %153 = vmatpush1.msra.mxu0 0.0
    %154 = vmatprep.subr.mxu0 0.0
    %155 = vmatpush1.msra.mxu0 0.0
    %156 = vmatprep.subr.mxu0 0.0
    %157 = vmatpush1.msra.mxu0 0.0
    %158 = vmatprep.subr.mxu0 0.0
    %159 = vmatpush1.msra.mxu0 0.0
    %160 = vmatprep.subr.mxu0 0.0
    %161 = vmatpush1.msra.mxu0 0.0
    %162 = vmatprep.subr.mxu0 0.0
    %163 = vmatpush1.msra.mxu0 0.0
    %164 = vmatprep.mubr.f32.mxu0 0.0
    %165 = vmatmul.mubr.f32.gmra.mrb[0].mxu0 %v98
    %v166 = vpop.f32.mrb[0].mxu0
    %v167 = vadd.f32 0.0, %v166
    %v168 = vpop.f32.mrb[0].mxu0
    %v169 = vadd.f32 0.0, %v168
    %170 = vdwg.mxu0
    %171 = vmatprep.subr.mxu0 %v89
    %172 = vmatpush1.msra.mxu0 %v88
    %173 = vmatprep.subr.mxu0 %v94
    %174 = vmatpush1.msra.mxu0 %v93
    %175 = vmatprep.subr.mxu0 0.0
    %176 = vmatpush1.msra.mxu0 0.0
    %177 = vmatprep.subr.mxu0 0.0
    %178 = vmatpush1.msra.mxu0 0.0
    %179 = vmatprep.subr.mxu0 0.0
    %180 = vmatpush1.msra.mxu0 0.0
    %181 = vmatprep.subr.mxu0 0.0
    %182 = vmatpush1.msra.mxu0 0.0
    %183 = vmatprep.subr.mxu0 0.0
    %184 = vmatpush1.msra.mxu0 0.0
    %185 = vmatprep.subr.mxu0 0.0
    %186 = vmatpush1.msra.mxu0 0.0
    %187 = vmatprep.subr.mxu0 0.0
    %188 = vmatpush1.msra.mxu0 0.0
    %189 = vmatprep.subr.mxu0 0.0
    %190 = vmatpush1.msra.mxu0 0.0
    %191 = vmatprep.subr.mxu0 0.0
    %192 = vmatpush1.msra.mxu0 0.0
    %193 = vmatprep.subr.mxu0 0.0
    %194 = vmatpush1.msra.mxu0 0.0
    %195 = vmatprep.subr.mxu0 0.0
    %196 = vmatpush1.msra.mxu0 0.0
    %197 = vmatprep.subr.mxu0 0.0
    %198 = vmatpush1.msra.mxu0 0.0
    %199 = vmatprep.subr.mxu0 0.0
    %200 = vmatpush1.msra.mxu0 0.0
    %201 = vmatprep.subr.mxu0 0.0
    %202 = vmatpush1.msra.mxu0 0.0
    %203 = vmatprep.subr.mxu0 0.0
    %204 = vmatpush1.msra.mxu0 0.0
    %205 = vmatprep.subr.mxu0 0.0
    %206 = vmatpush1.msra.mxu0 0.0
    %207 = vmatprep.subr.mxu0 0.0
    %208 = vmatpush1.msra.mxu0 0.0
    %209 = vmatprep.subr.mxu0 0.0
    %210 = vmatpush1.msra.mxu0 0.0
    %211 = vmatprep.subr.mxu0 0.0
    %212 = vmatpush1.msra.mxu0 0.0
    %213 = vmatprep.subr.mxu0 0.0
    %214 = vmatpush1.msra.mxu0 0.0
    %215 = vmatprep.subr.mxu0 0.0
    %216 = vmatpush1.msra.mxu0 0.0
    %217 = vmatprep.subr.mxu0 0.0
    %218 = vmatpush1.msra.mxu0 0.0
    %219 = vmatprep.subr.mxu0 0.0
    %220 = vmatpush1.msra.mxu0 0.0
    %221 = vmatprep.subr.mxu0 0.0
    %222 = vmatpush1.msra.mxu0 0.0
    %223 = vmatprep.subr.mxu0 0.0
    %224 = vmatpush1.msra.mxu0 0.0
    %225 = vmatprep.subr.mxu0 0.0
    %226 = vmatpush1.msra.mxu0 0.0
    %227 = vmatprep.subr.mxu0 0.0
    %228 = vmatpush1.msra.mxu0 0.0
    %229 = vmatprep.subr.mxu0 0.0
    %230 = vmatpush1.msra.mxu0 0.0
    %231 = vmatprep.subr.mxu0 0.0
    %232 = vmatpush1.msra.mxu0 0.0
    %233 = vmatprep.subr.mxu0 0.0
    %234 = vmatpush1.msra.mxu0 0.0
    %235 = vmatprep.mubr.f32.mxu0 0.0
    %236 = vmatmul.mubr.f32.gmra.mrb[0].mxu0 %v98
    %v237 = vpop.f32.mrb[0].mxu0
    %v238 = vadd.f32 0.0, %v237
    %v239 = vpop.f32.mrb[0].mxu0
    %v240 = vadd.f32 0.0, %v239
    %241 = vdwg.mxu0
    %242 = vmatprep.subr.mxu0 0.0
    %243 = vmatpush1.msra.mxu0 %v90
    %244 = vmatprep.subr.mxu0 0.0
    %245 = vmatpush1.msra.mxu0 %v95
    %246 = vmatprep.subr.mxu0 0.0
    %247 = vmatpush1.msra.mxu0 0.0
    %248 = vmatprep.subr.mxu0 0.0
    %249 = vmatpush1.msra.mxu0 0.0
    %250 = vmatprep.subr.mxu0 0.0
    %251 = vmatpush1.msra.mxu0 0.0
    %252 = vmatprep.subr.mxu0 0.0
    %253 = vmatpush1.msra.mxu0 0.0
    %254 = vmatprep.subr.mxu0 0.0
    %255 = vmatpush1.msra.mxu0 0.0
    %256 = vmatprep.subr.mxu0 0.0
    %257 = vmatpush1.msra.mxu0 0.0
    %258 = vmatprep.subr.mxu0 0.0
    %259 = vmatpush1.msra.mxu0 0.0
    %260 = vmatprep.subr.mxu0 0.0
    %261 = vmatpush1.msra.mxu0 0.0
    %262 = vmatprep.subr.mxu0 0.0
    %263 = vmatpush1.msra.mxu0 0.0
    %264 = vmatprep.subr.mxu0 0.0
    %265 = vmatpush1.msra.mxu0 0.0
    %266 = vmatprep.subr.mxu0 0.0
    %267 = vmatpush1.msra.mxu0 0.0
    %268 = vmatprep.subr.mxu0 0.0
    %269 = vmatpush1.msra.mxu0 0.0
    %270 = vmatprep.subr.mxu0 0.0
    %271 = vmatpush1.msra.mxu0 0.0
    %272 = vmatprep.subr.mxu0 0.0
    %273 = vmatpush1.msra.mxu0 0.0
    %274 = vmatprep.subr.mxu0 0.0
    %275 = vmatpush1.msra.mxu0 0.0
    %276 = vmatprep.subr.mxu0 0.0
    %277 = vmatpush1.msra.mxu0 0.0
    %278 = vmatprep.subr.mxu0 0.0
    %279 = vmatpush1.msra.mxu0 0.0
    %280 = vmatprep.subr.mxu0 0.0
    %281 = vmatpush1.msra.mxu0 0.0
    %282 = vmatprep.subr.mxu0 0.0
    %283 = vmatpush1.msra.mxu0 0.0
    %284 = vmatprep.subr.mxu0 0.0
    %285 = vmatpush1.msra.mxu0 0.0
    %286 = vmatprep.subr.mxu0 0.0
    %287 = vmatpush1.msra.mxu0 0.0
    %288 = vmatprep.subr.mxu0 0.0
    %289 = vmatpush1.msra.mxu0 0.0
    %290 = vmatprep.subr.mxu0 0.0
    %291 = vmatpush1.msra.mxu0 0.0
    %292 = vmatprep.subr.mxu0 0.0
    %293 = vmatpush1.msra.mxu0 0.0
    %294 = vmatprep.subr.mxu0 0.0
    %295 = vmatpush1.msra.mxu0 0.0
    %296 = vmatprep.subr.mxu0 0.0
    %297 = vmatpush1.msra.mxu0 0.0
    %298 = vmatprep.subr.mxu0 0.0
    %299 = vmatpush1.msra.mxu0 0.0
    %300 = vmatprep.subr.mxu0 0.0
    %301 = vmatpush1.msra.mxu0 0.0
    %302 = vmatprep.subr.mxu0 0.0
    %303 = vmatpush1.msra.mxu0 0.0
    %304 = vmatprep.subr.mxu0 0.0
    %305 = vmatpush1.msra.mxu0 0.0
    %306 = vmatprep.mubr.f32.mxu0 0.0
    %307 = vmatmul.mubr.f32.gmra.mrb[0].mxu0 %v98
    %v308 = vpop.f32.mrb[0].mxu0
    %v309 = vadd.f32 0.0, %v308
    %v310 = vpop.f32.mrb[0].mxu0
    %311 = vdwg.mxu0
    %v312 = vld [vmem:[#allocation7] sm:$0xff]
    %v313 = vld [vmem:[#allocation7 + $0x8] sm:$0xff]
    %v314 = vld [vmem:[#allocation7 + $0x10] sm:$0xff]
    %v315 = vld [vmem:[#allocation7 + $0x18] sm:$0xff]
    %v316 = vld [vmem:[#allocation7 + $0x20] sm:$0xff]
    %v317 = vld [vmem:[#allocation7 + $0x28] sm:$0xff]
    %v318 = vld [vmem:[#allocation7 + $0x30] sm:$0xff]
    %v319 = vld [vmem:[#allocation7 + $0x38] sm:$0xff]
    %v320 = vld [vmem:[#allocation7 + $0x40] sm:$0xff]
    %v321 = vld [vmem:[#allocation7 + $0x48] sm:$0xff]
    %322 = vmatprep.subr.mxu0 %v313
    %323 = vmatpush1.msra.mxu0 %v312
    %324 = vmatprep.subr.mxu0 %v318
    %325 = vmatpush1.msra.mxu0 %v317
    %326 = vmatprep.subr.mxu0 0.0
    %327 = vmatpush1.msra.mxu0 0.0
    %328 = vmatprep.subr.mxu0 0.0
    %329 = vmatpush1.msra.mxu0 0.0
    %330 = vmatprep.subr.mxu0 0.0
    %331 = vmatpush1.msra.mxu0 0.0
    %332 = vmatprep.subr.mxu0 0.0
    %333 = vmatpush1.msra.mxu0 0.0
    %334 = vmatprep.subr.mxu0 0.0
    %335 = vmatpush1.msra.mxu0 0.0
    %336 = vmatprep.subr.mxu0 0.0
    %337 = vmatpush1.msra.mxu0 0.0
    %338 = vmatprep.subr.mxu0 0.0
    %339 = vmatpush1.msra.mxu0 0.0
    %340 = vmatprep.subr.mxu0 0.0
    %341 = vmatpush1.msra.mxu0 0.0
    %342 = vmatprep.subr.mxu0 0.0
    %343 = vmatpush1.msra.mxu0 0.0
    %344 = vmatprep.subr.mxu0 0.0
    %345 = vmatpush1.msra.mxu0 0.0
    %346 = vmatprep.subr.mxu0 0.0
    %347 = vmatpush1.msra.mxu0 0.0
    %348 = vmatprep.subr.mxu0 0.0
    %349 = vmatpush1.msra.mxu0 0.0
    %350 = vmatprep.subr.mxu0 0.0
    %351 = vmatpush1.msra.mxu0 0.0
    %352 = vmatprep.subr.mxu0 0.0
    %353 = vmatpush1.msra.mxu0 0.0
    %354 = vmatprep.subr.mxu0 0.0
    %355 = vmatpush1.msra.mxu0 0.0
    %356 = vmatprep.subr.mxu0 0.0
    %357 = vmatpush1.msra.mxu0 0.0
    %358 = vmatprep.subr.mxu0 0.0
    %359 = vmatpush1.msra.mxu0 0.0
    %360 = vmatprep.subr.mxu0 0.0
    %361 = vmatpush1.msra.mxu0 0.0
    %362 = vmatprep.subr.mxu0 0.0
    %363 = vmatpush1.msra.mxu0 0.0
    %364 = vmatprep.subr.mxu0 0.0
    %365 = vmatpush1.msra.mxu0 0.0
    %366 = vmatprep.subr.mxu0 0.0
    %367 = vmatpush1.msra.mxu0 0.0
    %368 = vmatprep.subr.mxu0 0.0
    %369 = vmatpush1.msra.mxu0 0.0
    %370 = vmatprep.subr.mxu0 0.0
    %371 = vmatpush1.msra.mxu0 0.0
    %372 = vmatprep.subr.mxu0 0.0
    %373 = vmatpush1.msra.mxu0 0.0
    %374 = vmatprep.subr.mxu0 0.0
    %375 = vmatpush1.msra.mxu0 0.0
    %376 = vmatprep.subr.mxu0 0.0
    %377 = vmatpush1.msra.mxu0 0.0
    %378 = vmatprep.subr.mxu0 0.0
    %379 = vmatpush1.msra.mxu0 0.0
    %380 = vmatprep.subr.mxu0 0.0
    %381 = vmatpush1.msra.mxu0 0.0
    %382 = vmatprep.subr.mxu0 0.0
    %383 = vmatpush1.msra.mxu0 0.0
    %384 = vmatprep.subr.mxu0 0.0
    %385 = vmatpush1.msra.mxu0 0.0
    %386 = vmatprep.mubr.f32.mxu0 0.0
    %387 = vmatmul.mubr.f32.gmra.mrb[0].mxu0 %v98
    %v388 = vpop.f32.mrb[0].mxu0
    %v389 = vadd.f32 0.0, %v388
    %v390 = vpop.f32.mrb[0].mxu0
    %v391 = vadd.f32 0.0, %v390
    %392 = vdwg.mxu0
    %393 = vmatprep.subr.mxu0 %v315
    %394 = vmatpush1.msra.mxu0 %v314
    %395 = vmatprep.subr.mxu0 %v320
    %396 = vmatpush1.msra.mxu0 %v319
    %397 = vmatprep.subr.mxu0 0.0
    %398 = vmatpush1.msra.mxu0 0.0
    %399 = vmatprep.subr.mxu0 0.0
    %400 = vmatpush1.msra.mxu0 0.0
    %401 = vmatprep.subr.mxu0 0.0
    %402 = vmatpush1.msra.mxu0 0.0
    %403 = vmatprep.subr.mxu0 0.0
    %404 = vmatpush1.msra.mxu0 0.0
    %405 = vmatprep.subr.mxu0 0.0
    %406 = vmatpush1.msra.mxu0 0.0
    %407 = vmatprep.subr.mxu0 0.0
    %408 = vmatpush1.msra.mxu0 0.0
    %409 = vmatprep.subr.mxu0 0.0
    %410 = vmatpush1.msra.mxu0 0.0
    %411 = vmatprep.subr.mxu0 0.0
    %412 = vmatpush1.msra.mxu0 0.0
    %413 = vmatprep.subr.mxu0 0.0
    %414 = vmatpush1.msra.mxu0 0.0
    %415 = vmatprep.subr.mxu0 0.0
    %416 = vmatpush1.msra.mxu0 0.0
    %417 = vmatprep.subr.mxu0 0.0
    %418 = vmatpush1.msra.mxu0 0.0
    %419 = vmatprep.subr.mxu0 0.0
    %420 = vmatpush1.msra.mxu0 0.0
    %421 = vmatprep.subr.mxu0 0.0
    %422 = vmatpush1.msra.mxu0 0.0
    %423 = vmatprep.subr.mxu0 0.0
    %424 = vmatpush1.msra.mxu0 0.0
    %425 = vmatprep.subr.mxu0 0.0
    %426 = vmatpush1.msra.mxu0 0.0
    %427 = vmatprep.subr.mxu0 0.0
    %428 = vmatpush1.msra.mxu0 0.0
    %429 = vmatprep.subr.mxu0 0.0
    %430 = vmatpush1.msra.mxu0 0.0
    %431 = vmatprep.subr.mxu0 0.0
    %432 = vmatpush1.msra.mxu0 0.0
    %433 = vmatprep.subr.mxu0 0.0
    %434 = vmatpush1.msra.mxu0 0.0
    %435 = vmatprep.subr.mxu0 0.0
    %436 = vmatpush1.msra.mxu0 0.0
    %437 = vmatprep.subr.mxu0 0.0
    %438 = vmatpush1.msra.mxu0 0.0
    %439 = vmatprep.subr.mxu0 0.0
    %440 = vmatpush1.msra.mxu0 0.0
    %441 = vmatprep.subr.mxu0 0.0
    %442 = vmatpush1.msra.mxu0 0.0
    %443 = vmatprep.subr.mxu0 0.0
    %444 = vmatpush1.msra.mxu0 0.0
    %445 = vmatprep.subr.mxu0 0.0
    %446 = vmatpush1.msra.mxu0 0.0
    %447 = vmatprep.subr.mxu0 0.0
    %448 = vmatpush1.msra.mxu0 0.0
    %449 = vmatprep.subr.mxu0 0.0
    %450 = vmatpush1.msra.mxu0 0.0
    %451 = vmatprep.subr.mxu0 0.0
    %452 = vmatpush1.msra.mxu0 0.0
    %453 = vmatprep.subr.mxu0 0.0
    %454 = vmatpush1.msra.mxu0 0.0
    %455 = vmatprep.subr.mxu0 0.0
    %456 = vmatpush1.msra.mxu0 0.0
    %457 = vmatprep.mubr.f32.mxu0 0.0
    %458 = vmatmul.mubr.f32.gmra.mrb[0].mxu0 %v98
    %v459 = vpop.f32.mrb[0].mxu0
    %v460 = vadd.f32 0.0, %v459
    %v461 = vpop.f32.mrb[0].mxu0
    %v462 = vadd.f32 0.0, %v461
    %463 = vdwg.mxu0
    %464 = vmatprep.subr.mxu0 0.0
    %465 = vmatpush1.msra.mxu0 %v316
    %466 = vmatprep.subr.mxu0 0.0
    %467 = vmatpush1.msra.mxu0 %v321
    %468 = vmatprep.subr.mxu0 0.0
    %469 = vmatpush1.msra.mxu0 0.0
    %470 = vmatprep.subr.mxu0 0.0
    %471 = vmatpush1.msra.mxu0 0.0
    %472 = vmatprep.subr.mxu0 0.0
    %473 = vmatpush1.msra.mxu0 0.0
    %474 = vmatprep.subr.mxu0 0.0
    %475 = vmatpush1.msra.mxu0 0.0
    %476 = vmatprep.subr.mxu0 0.0
    %477 = vmatpush1.msra.mxu0 0.0
    %478 = vmatprep.subr.mxu0 0.0
    %479 = vmatpush1.msra.mxu0 0.0
    %480 = vmatprep.subr.mxu0 0.0
    %481 = vmatpush1.msra.mxu0 0.0
    %482 = vmatprep.subr.mxu0 0.0
    %483 = vmatpush1.msra.mxu0 0.0
    %484 = vmatprep.subr.mxu0 0.0
    %485 = vmatpush1.msra.mxu0 0.0
    %486 = vmatprep.subr.mxu0 0.0
    %487 = vmatpush1.msra.mxu0 0.0
    %488 = vmatprep.subr.mxu0 0.0
    %489 = vmatpush1.msra.mxu0 0.0
    %490 = vmatprep.subr.mxu0 0.0
    %491 = vmatpush1.msra.mxu0 0.0
    %492 = vmatprep.subr.mxu0 0.0
    %493 = vmatpush1.msra.mxu0 0.0
    %494 = vmatprep.subr.mxu0 0.0
    %495 = vmatpush1.msra.mxu0 0.0
    %496 = vmatprep.subr.mxu0 0.0
    %497 = vmatpush1.msra.mxu0 0.0
    %498 = vmatprep.subr.mxu0 0.0
    %499 = vmatpush1.msra.mxu0 0.0
    %500 = vmatprep.subr.mxu0 0.0
    %501 = vmatpush1.msra.mxu0 0.0
    %502 = vmatprep.subr.mxu0 0.0
    %503 = vmatpush1.msra.mxu0 0.0
    %504 = vmatprep.subr.mxu0 0.0
    %505 = vmatpush1.msra.mxu0 0.0
    %506 = vmatprep.subr.mxu0 0.0
    %507 = vmatpush1.msra.mxu0 0.0
    %508 = vmatprep.subr.mxu0 0.0
    %509 = vmatpush1.msra.mxu0 0.0
    %510 = vmatprep.subr.mxu0 0.0
    %511 = vmatpush1.msra.mxu0 0.0
    %512 = vmatprep.subr.mxu0 0.0
    %513 = vmatpush1.msra.mxu0 0.0
    %514 = vmatprep.subr.mxu0 0.0
    %515 = vmatpush1.msra.mxu0 0.0
    %516 = vmatprep.subr.mxu0 0.0
    %517 = vmatpush1.msra.mxu0 0.0
    %518 = vmatprep.subr.mxu0 0.0
    %519 = vmatpush1.msra.mxu0 0.0
    %520 = vmatprep.subr.mxu0 0.0
    %521 = vmatpush1.msra.mxu0 0.0
    %522 = vmatprep.subr.mxu0 0.0
    %523 = vmatpush1.msra.mxu0 0.0
    %524 = vmatprep.subr.mxu0 0.0
    %525 = vmatpush1.msra.mxu0 0.0
    %526 = vmatprep.subr.mxu0 0.0
    %527 = vmatpush1.msra.mxu0 0.0
    %528 = vmatprep.mubr.f32.mxu0 0.0
    %529 = vmatmul.mubr.f32.gmra.mrb[0].mxu0 %v98
    %v530 = vpop.f32.mrb[0].mxu0
    %v531 = vadd.f32 0.0, %v530
    %v532 = vpop.f32.mrb[0].mxu0
    %533 = vdwg.mxu0
    %v534 = vmul.f32 %v167, %v167
    %v535 = vmul.f32 %v169, %v169
    %v536 = vmul.f32 %v238, %v238
    %v537 = vmul.f32 %v240, %v240
    %v538 = vmul.f32 %v309, %v309
    %v539 = vmul.f32 %v389, %v389
    %v540 = vmul.f32 %v391, %v391
    %v541 = vmul.f32 %v460, %v460
    %v542 = vmul.f32 %v462, %v462
    %v543 = vmul.f32 %v531, %v531
    %v544 = vadd.f32 %v534, %v539
    %v545 = vadd.f32 %v535, %v540
    %v546 = vadd.f32 %v536, %v541
    %v547 = vadd.f32 %v537, %v542
    %v548 = vadd.f32 %v538, %v543
    %v549 = vrsqrt.pop %v544
    %v550 = vmul.f32 %v544, %v549
    %vm551 = vcmp.eq.f32.partialorder %v544, inf
    %v552 = vsel %vm551, %v544, %v550
    %vm553 = vcmp.eq.f32.partialorder %v544, 0.0
    %v554 = vand.u32 %v544, 2147483648
    %v555 = vsel %vm553, %v554, %v552
    %v556 = vrsqrt.pop %v545
    %v557 = vmul.f32 %v545, %v556
    %vm558 = vcmp.eq.f32.partialorder %v545, inf
    %v559 = vsel %vm558, %v545, %v557
    %vm560 = vcmp.eq.f32.partialorder %v545, 0.0
    %v561 = vand.u32 %v545, 2147483648
    %v562 = vsel %vm560, %v561, %v559
    %v563 = vrsqrt.pop %v546
    %v564 = vmul.f32 %v546, %v563
    %vm565 = vcmp.eq.f32.partialorder %v546, inf
    %v566 = vsel %vm565, %v546, %v564
    %vm567 = vcmp.eq.f32.partialorder %v546, 0.0
    %v568 = vand.u32 %v546, 2147483648
    %v569 = vsel %vm567, %v568, %v566
    %v570 = vrsqrt.pop %v547
    %v571 = vmul.f32 %v547, %v570
    %vm572 = vcmp.eq.f32.partialorder %v547, inf
    %v573 = vsel %vm572, %v547, %v571
    %vm574 = vcmp.eq.f32.partialorder %v547, 0.0
    %v575 = vand.u32 %v547, 2147483648
    %v576 = vsel %vm574, %v575, %v573
    %v577 = vrsqrt.pop %v548
    %v578 = vmul.f32 %v548, %v577
    %vm579 = vcmp.eq.f32.partialorder %v548, inf
    %v580 = vsel %vm579, %v548, %v578
    %vm581 = vcmp.eq.f32.partialorder %v548, 0.0
    %v582 = vand.u32 %v548, 2147483648
    %v583 = vsel %vm581, %v582, %v580
    %v584 = vld [vmem:[#allocation8] sm:$0xff]
    %v585 = vld [vmem:[#allocation8 + $0x8] sm:$0xff]
    %v586 = vld [vmem:[#allocation8 + $0x10] sm:$0xff]
    %v587 = vld [vmem:[#allocation8 + $0x18] sm:$0xff]
    %v588 = vld [vmem:[#allocation8 + $0x20] sm:$0xff]
    %v589 = vld [vmem:[#allocation8 + $0x28] sm:$0xff]
    %v590 = vld [vmem:[#allocation8 + $0x30] sm:$0xff]
    %v591 = vld [vmem:[#allocation8 + $0x38] sm:$0xff]
    %v592 = vld [vmem:[#allocation8 + $0x40] sm:$0xff]
    %v593 = vld [vmem:[#allocation8 + $0x48] sm:$0xff]
    %v594 = vld [vmem:[#allocation8 + $0x50] sm:$0xff]
    %v595 = vld [vmem:[#allocation8 + $0x58] sm:$0xff]
    %v596 = vld [vmem:[#allocation8 + $0x60] sm:$0xff]
    %v597 = vld [vmem:[#allocation8 + $0x68] sm:$0xff]
    %v598 = vld [vmem:[#allocation8 + $0x70] sm:$0xff]
    %v599 = vld [vmem:[#allocation8 + $0x78] sm:$0xff]
    %v600 = vld [vmem:[#allocation8 + $0x80] sm:$0xff]
    %v601 = vld [vmem:[#allocation8 + $0x88] sm:$0xff]
    %v602 = vld [vmem:[#allocation8 + $0x90] sm:$0xff]
    %v603 = vld [vmem:[#allocation8 + $0x98] sm:$0xff]
    %v604 = vld [vmem:[#allocation8 + $0xa0] sm:$0xff]
    %v605 = vld [vmem:[#allocation8 + $0xa8] sm:$0xff]
    %v606 = vld [vmem:[#allocation8 + $0xb0] sm:$0xff]
    %v607 = vld [vmem:[#allocation8 + $0xb8] sm:$0xff]
    %v608 = vld [vmem:[#allocation8 + $0xc0] sm:$0xff]
    %v609 = vld [vmem:[#allocation8 + $0xc8] sm:$0xff]
    %v610 = vld [vmem:[#allocation8 + $0xd0] sm:$0xff]
    %v611 = vld [vmem:[#allocation8 + $0xd8] sm:$0xff]
    %v612 = vld [vmem:[#allocation8 + $0xe0] sm:$0xff]
    %v613 = vld [vmem:[#allocation8 + $0xe8] sm:$0xff]
    %v614 = vld [vmem:[#allocation8 + $0xf0] sm:$0xff]
    %v615 = vld [vmem:[#allocation8 + $0xf8] sm:$0xff]
    %v616 = vld [vmem:[#allocation8 + $0x100] sm:$0xff]
    %v617 = vld [vmem:[#allocation8 + $0x108] sm:$0xff]
    %v618 = vld [vmem:[#allocation8 + $0x110] sm:$0xff]
    %v619 = vld [vmem:[#allocation8 + $0x118] sm:$0xff]
    %v620 = vld [vmem:[#allocation8 + $0x120] sm:$0xff]
    %v621 = vld [vmem:[#allocation8 + $0x128] sm:$0xff]
    %v622 = vld [vmem:[#allocation8 + $0x130] sm:$0xff]
    %v623 = vld [vmem:[#allocation8 + $0x138] sm:$0xff]
    %v624 = vld [vmem:[#allocation8 + $0x140] sm:$0xff]
    %v625 = vld [vmem:[#allocation8 + $0x148] sm:$0xff]
    %v626 = vld [vmem:[#allocation8 + $0x150] sm:$0xff]
    %v627 = vld [vmem:[#allocation8 + $0x158] sm:$0xff]
    %v628 = vld [vmem:[#allocation8 + $0x160] sm:$0xff]
    %v629 = vld [vmem:[#allocation8 + $0x168] sm:$0xff]
    %v630 = vld [vmem:[#allocation8 + $0x170] sm:$0xff]
    %v631 = vld [vmem:[#allocation8 + $0x178] sm:$0xff]
    %v632 = vld [vmem:[#allocation8 + $0x180] sm:$0xff]
    %v633 = vld [vmem:[#allocation8 + $0x188] sm:$0xff]
    %v634 = vld [vmem:[#allocation8 + $0x190] sm:$0xff]
    %v635 = vld [vmem:[#allocation8 + $0x198] sm:$0xff]
    %v636 = vld [vmem:[#allocation8 + $0x1a0] sm:$0xff]
    %v637 = vld [vmem:[#allocation8 + $0x1a8] sm:$0xff]
    %v638 = vld [vmem:[#allocation8 + $0x1b0] sm:$0xff]
    %v639 = vld [vmem:[#allocation8 + $0x1b8] sm:$0xff]
    %v640 = vld [vmem:[#allocation8 + $0x1c0] sm:$0xff]
    %v641 = vld [vmem:[#allocation8 + $0x1c8] sm:$0xff]
    %v642 = vld [vmem:[#allocation8 + $0x1d0] sm:$0xff]
    %v643 = vld [vmem:[#allocation8 + $0x1d8] sm:$0xff]
    %v644 = vld [vmem:[#allocation8 + $0x1e0] sm:$0xff]
    %v645 = vld [vmem:[#allocation8 + $0x1e8] sm:$0xff]
    %v646 = vld [vmem:[#allocation8 + $0x1f0] sm:$0xff]
    %v647 = vld [vmem:[#allocation8 + $0x1f8] sm:$0xff]
    %v648 = vld [vmem:[#allocation8 + $0x200] sm:$0xff]
    %v649 = vld [vmem:[#allocation8 + $0x208] sm:$0xff]
    %v650 = vld [vmem:[#allocation8 + $0x210] sm:$0xff]
    %v651 = vld [vmem:[#allocation8 + $0x218] sm:$0xff]
    %v652 = vld [vmem:[#allocation8 + $0x220] sm:$0xff]
    %v653 = vld [vmem:[#allocation8 + $0x228] sm:$0xff]
    %v654 = vld [vmem:[#allocation8 + $0x230] sm:$0xff]
    %v655 = vld [vmem:[#allocation8 + $0x238] sm:$0xff]
    %v656 = vld [vmem:[#allocation8 + $0x240] sm:$0xff]
    %v657 = vld [vmem:[#allocation8 + $0x248] sm:$0xff]
    %v658 = vld [vmem:[#allocation8 + $0x250] sm:$0xff]
    %v659 = vld [vmem:[#allocation8 + $0x258] sm:$0xff]
    %v660 = vld [vmem:[#allocation8 + $0x260] sm:$0xff]
    %v661 = vld [vmem:[#allocation8 + $0x268] sm:$0xff]
    %v662 = vld [vmem:[#allocation8 + $0x270] sm:$0xff]
    %v663 = vld [vmem:[#allocation8 + $0x278] sm:$0xff]
    %v664 = vld [vmem:[#allocation8 + $0x280] sm:$0xff]
    %v665 = vld [vmem:[#allocation8 + $0x288] sm:$0xff]
    %v666 = vld [vmem:[#allocation8 + $0x290] sm:$0xff]
    %v667 = vld [vmem:[#allocation8 + $0x298] sm:$0xff]
    %v668 = vld [vmem:[#allocation8 + $0x2a0] sm:$0xff]
    %v669 = vld [vmem:[#allocation8 + $0x2a8] sm:$0xff]
    %v670 = vld [vmem:[#allocation8 + $0x2b0] sm:$0xff]
    %v671 = vld [vmem:[#allocation8 + $0x2b8] sm:$0xff]
    %v672 = vld [vmem:[#allocation8 + $0x2c0] sm:$0xff]
    %v673 = vld [vmem:[#allocation8 + $0x2c8] sm:$0xff]
    %v674 = vld [vmem:[#allocation8 + $0x2d0] sm:$0xff]
    %v675 = vld [vmem:[#allocation8 + $0x2d8] sm:$0xff]
    %v676 = vld [vmem:[#allocation8 + $0x2e0] sm:$0xff]
    %v677 = vld [vmem:[#allocation8 + $0x2e8] sm:$0xff]
    %v678 = vld [vmem:[#allocation8 + $0x2f0] sm:$0xff]
    %v679 = vld [vmem:[#allocation8 + $0x2f8] sm:$0xff]
    %v680 = vld [vmem:[#allocation8 + $0x300] sm:$0xff]
    %v681 = vld [vmem:[#allocation8 + $0x308] sm:$0xff]
    %v682 = vld [vmem:[#allocation8 + $0x310] sm:$0xff]
    %v683 = vld [vmem:[#allocation8 + $0x318] sm:$0xff]
    %v684 = vld [vmem:[#allocation8 + $0x320] sm:$0xff]
    %v685 = vld [vmem:[#allocation8 + $0x328] sm:$0xff]
    %v686 = vld [vmem:[#allocation8 + $0x330] sm:$0xff]
    %v687 = vld [vmem:[#allocation8 + $0x338] sm:$0xff]
    %v688 = vld [vmem:[#allocation8 + $0x340] sm:$0xff]
    %v689 = vld [vmem:[#allocation8 + $0x348] sm:$0xff]
    %v690 = vld [vmem:[#allocation8 + $0x350] sm:$0xff]
    %v691 = vld [vmem:[#allocation8 + $0x358] sm:$0xff]
    %v692 = vld [vmem:[#allocation8 + $0x360] sm:$0xff]
    %v693 = vld [vmem:[#allocation8 + $0x368] sm:$0xff]
    %v694 = vld [vmem:[#allocation8 + $0x370] sm:$0xff]
    %v695 = vld [vmem:[#allocation8 + $0x378] sm:$0xff]
    %v696 = vld [vmem:[#allocation8 + $0x380] sm:$0xff]
    %v697 = vld [vmem:[#allocation8 + $0x388] sm:$0xff]
    %v698 = vld [vmem:[#allocation8 + $0x390] sm:$0xff]
    %v699 = vld [vmem:[#allocation8 + $0x398] sm:$0xff]
    %v700 = vld [vmem:[#allocation8 + $0x3a0] sm:$0xff]
    %v701 = vld [vmem:[#allocation8 + $0x3a8] sm:$0xff]
    %v702 = vld [vmem:[#allocation8 + $0x3b0] sm:$0xff]
    %v703 = vld [vmem:[#allocation8 + $0x3b8] sm:$0xff]
    %v704 = vld [vmem:[#allocation8 + $0x3c0] sm:$0xff]
    %v705 = vld [vmem:[#allocation8 + $0x3c8] sm:$0xff]
    %v706 = vld [vmem:[#allocation8 + $0x3d0] sm:$0xff]
    %v707 = vld [vmem:[#allocation8 + $0x3d8] sm:$0xff]
    %v708 = vld [vmem:[#allocation8 + $0x3e0] sm:$0xff]
    %v709 = vld [vmem:[#allocation8 + $0x3e8] sm:$0xff]
    %v710 = vld [vmem:[#allocation8 + $0x3f0] sm:$0xff]
    %v711 = vld [vmem:[#allocation8 + $0x3f8] sm:$0xff]
    %v712 = vld [vmem:[#allocation8 + $0x400] sm:$0xff]
    %v713 = vld [vmem:[#allocation8 + $0x408] sm:$0xff]
    %v714 = vld [vmem:[#allocation8 + $0x410] sm:$0xff]
    %v715 = vld [vmem:[#allocation8 + $0x418] sm:$0xff]
    %v716 = vld [vmem:[#allocation8 + $0x420] sm:$0xff]
    %v717 = vld [vmem:[#allocation8 + $0x428] sm:$0xff]
    %v718 = vld [vmem:[#allocation8 + $0x430] sm:$0xff]
    %v719 = vld [vmem:[#allocation8 + $0x438] sm:$0xff]
    %v720 = vld [vmem:[#allocation8 + $0x440] sm:$0xff]
    %v721 = vld [vmem:[#allocation8 + $0x448] sm:$0xff]
    %v722 = vld [vmem:[#allocation8 + $0x450] sm:$0xff]
    %v723 = vld [vmem:[#allocation8 + $0x458] sm:$0xff]
    %v724 = vld [vmem:[#allocation8 + $0x460] sm:$0xff]
    %v725 = vld [vmem:[#allocation8 + $0x468] sm:$0xff]
    %v726 = vld [vmem:[#allocation8 + $0x470] sm:$0xff]
    %v727 = vld [vmem:[#allocation8 + $0x478] sm:$0xff]
    %v728 = vld [vmem:[#allocation8 + $0x480] sm:$0xff]
    %v729 = vld [vmem:[#allocation8 + $0x488] sm:$0xff]
    %v730 = vld [vmem:[#allocation8 + $0x490] sm:$0xff]
    %v731 = vld [vmem:[#allocation8 + $0x498] sm:$0xff]
    %v732 = vld [vmem:[#allocation8 + $0x4a0] sm:$0xff]
    %v733 = vld [vmem:[#allocation8 + $0x4a8] sm:$0xff]
    %v734 = vld [vmem:[#allocation8 + $0x4b0] sm:$0xff]
    %v735 = vld [vmem:[#allocation8 + $0x4b8] sm:$0xff]
    %v736 = vld [vmem:[#allocation8 + $0x4c0] sm:$0xff]
    %v737 = vld [vmem:[#allocation8 + $0x4c8] sm:$0xff]
    %v738 = vld [vmem:[#allocation8 + $0x4d0] sm:$0xff]
    %v739 = vld [vmem:[#allocation8 + $0x4d8] sm:$0xff]
    %v740 = vld [vmem:[#allocation8 + $0x4e0] sm:$0xff]
    %v741 = vld [vmem:[#allocation8 + $0x4e8] sm:$0xff]
    %v742 = vld [vmem:[#allocation8 + $0x4f0] sm:$0xff]
    %v743 = vld [vmem:[#allocation8 + $0x4f8] sm:$0xff]
    %v744 = vld [vmem:[#allocation8 + $0x500] sm:$0xff]
    %v745 = vld [vmem:[#allocation8 + $0x508] sm:$0xff]
    %v746 = vld [vmem:[#allocation8 + $0x510] sm:$0xff]
    %v747 = vld [vmem:[#allocation8 + $0x518] sm:$0xff]
    %v748 = vld [vmem:[#allocation8 + $0x520] sm:$0xff]
    %v749 = vld [vmem:[#allocation8 + $0x528] sm:$0xff]
    %v750 = vld [vmem:[#allocation8 + $0x530] sm:$0xff]
    %v751 = vld [vmem:[#allocation8 + $0x538] sm:$0xff]
    %v752 = vld [vmem:[#allocation8 + $0x540] sm:$0xff]
    %v753 = vld [vmem:[#allocation8 + $0x548] sm:$0xff]
    %v754 = vld [vmem:[#allocation8 + $0x550] sm:$0xff]
    %v755 = vld [vmem:[#allocation8 + $0x558] sm:$0xff]
    %v756 = vld [vmem:[#allocation8 + $0x560] sm:$0xff]
    %v757 = vld [vmem:[#allocation8 + $0x568] sm:$0xff]
    %v758 = vld [vmem:[#allocation8 + $0x570] sm:$0xff]
    %v759 = vld [vmem:[#allocation8 + $0x578] sm:$0xff]
    %v760 = vld [vmem:[#allocation8 + $0x580] sm:$0xff]
    %v761 = vld [vmem:[#allocation8 + $0x588] sm:$0xff]
    %v762 = vld [vmem:[#allocation8 + $0x590] sm:$0xff]
    %v763 = vld [vmem:[#allocation8 + $0x598] sm:$0xff]
    %v764 = vld [vmem:[#allocation8 + $0x5a0] sm:$0xff]
    %v765 = vld [vmem:[#allocation8 + $0x5a8] sm:$0xff]
    %v766 = vld [vmem:[#allocation8 + $0x5b0] sm:$0xff]
    %v767 = vld [vmem:[#allocation8 + $0x5b8] sm:$0xff]
    %v768 = vld [vmem:[#allocation8 + $0x5c0] sm:$0xff]
    %v769 = vld [vmem:[#allocation8 + $0x5c8] sm:$0xff]
    %v770 = vld [vmem:[#allocation8 + $0x5d0] sm:$0xff]
    %v771 = vld [vmem:[#allocation8 + $0x5d8] sm:$0xff]
    %v772 = vld [vmem:[#allocation8 + $0x5e0] sm:$0xff]
    %v773 = vld [vmem:[#allocation8 + $0x5e8] sm:$0xff]
    %v774 = vld [vmem:[#allocation8 + $0x5f0] sm:$0xff]
    %v775 = vld [vmem:[#allocation8 + $0x5f8] sm:$0xff]
    %v776 = vld [vmem:[#allocation8 + $0x600] sm:$0xff]
    %v777 = vld [vmem:[#allocation8 + $0x608] sm:$0xff]
    %v778 = vld [vmem:[#allocation8 + $0x610] sm:$0xff]
    %v779 = vld [vmem:[#allocation8 + $0x618] sm:$0xff]
    %v780 = vld [vmem:[#allocation8 + $0x620] sm:$0xff]
    %v781 = vld [vmem:[#allocation8 + $0x628] sm:$0xff]
    %v782 = vld [vmem:[#allocation8 + $0x630] sm:$0xff]
    %v783 = vld [vmem:[#allocation8 + $0x638] sm:$0xff]
    %v784 = vld [vmem:[#allocation8 + $0x640] sm:$0xff]
    %v785 = vld [vmem:[#allocation8 + $0x648] sm:$0xff]
    %v786 = vld [vmem:[#allocation8 + $0x650] sm:$0xff]
    %v787 = vld [vmem:[#allocation8 + $0x658] sm:$0xff]
    %v788 = vld [vmem:[#allocation8 + $0x660] sm:$0xff]
    %v789 = vld [vmem:[#allocation8 + $0x668] sm:$0xff]
    %v790 = vld [vmem:[#allocation8 + $0x670] sm:$0xff]
    %v791 = vld [vmem:[#allocation8 + $0x678] sm:$0xff]
    %v792 = vld [vmem:[#allocation8 + $0x680] sm:$0xff]
    %v793 = vld [vmem:[#allocation8 + $0x688] sm:$0xff]
    %v794 = vld [vmem:[#allocation8 + $0x690] sm:$0xff]
    %v795 = vld [vmem:[#allocation8 + $0x698] sm:$0xff]
    %v796 = vld [vmem:[#allocation8 + $0x6a0] sm:$0xff]
    %v797 = vld [vmem:[#allocation8 + $0x6a8] sm:$0xff]
    %v798 = vld [vmem:[#allocation8 + $0x6b0] sm:$0xff]
    %v799 = vld [vmem:[#allocation8 + $0x6b8] sm:$0xff]
    %v800 = vld [vmem:[#allocation8 + $0x6c0] sm:$0xff]
    %v801 = vld [vmem:[#allocation8 + $0x6c8] sm:$0xff]
    %v802 = vld [vmem:[#allocation8 + $0x6d0] sm:$0xff]
    %v803 = vld [vmem:[#allocation8 + $0x6d8] sm:$0xff]
    %v804 = vld [vmem:[#allocation8 + $0x6e0] sm:$0xff]
    %v805 = vld [vmem:[#allocation8 + $0x6e8] sm:$0xff]
    %v806 = vld [vmem:[#allocation8 + $0x6f0] sm:$0xff]
    %v807 = vld [vmem:[#allocation8 + $0x6f8] sm:$0xff]
    %v808 = vld [vmem:[#allocation8 + $0x700] sm:$0xff]
    %v809 = vld [vmem:[#allocation8 + $0x708] sm:$0xff]
    %v810 = vld [vmem:[#allocation8 + $0x710] sm:$0xff]
    %v811 = vld [vmem:[#allocation8 + $0x718] sm:$0xff]
    %v812 = vld [vmem:[#allocation8 + $0x720] sm:$0xff]
    %v813 = vld [vmem:[#allocation8 + $0x728] sm:$0xff]
    %v814 = vld [vmem:[#allocation8 + $0x730] sm:$0xff]
    %v815 = vld [vmem:[#allocation8 + $0x738] sm:$0xff]
    %v816 = vld [vmem:[#allocation8 + $0x740] sm:$0xff]
    %v817 = vld [vmem:[#allocation8 + $0x748] sm:$0xff]
    %v818 = vld [vmem:[#allocation8 + $0x750] sm:$0xff]
    %v819 = vld [vmem:[#allocation8 + $0x758] sm:$0xff]
    %v820 = vld [vmem:[#allocation8 + $0x760] sm:$0xff]
    %v821 = vld [vmem:[#allocation8 + $0x768] sm:$0xff]
    %v822 = vld [vmem:[#allocation8 + $0x770] sm:$0xff]
    %v823 = vld [vmem:[#allocation8 + $0x778] sm:$0xff]
    %v824 = vld [vmem:[#allocation8 + $0x780] sm:$0xff]
    %v825 = vld [vmem:[#allocation8 + $0x788] sm:$0xff]
    %v826 = vld [vmem:[#allocation8 + $0x790] sm:$0xff]
    %v827 = vld [vmem:[#allocation8 + $0x798] sm:$0xff]
    %v828 = vld [vmem:[#allocation8 + $0x7a0] sm:$0xff]
    %v829 = vld [vmem:[#allocation8 + $0x7a8] sm:$0xff]
    %v830 = vld [vmem:[#allocation8 + $0x7b0] sm:$0xff]
    %v831 = vld [vmem:[#allocation8 + $0x7b8] sm:$0xff]
    %v832 = vld [vmem:[#allocation8 + $0x7c0] sm:$0xff]
    %v833 = vld [vmem:[#allocation8 + $0x7c8] sm:$0xff]
    %v834 = vld [vmem:[#allocation8 + $0x7d0] sm:$0xff]
    %v835 = vld [vmem:[#allocation8 + $0x7d8] sm:$0xff]
    %v836 = vld [vmem:[#allocation8 + $0x7e0] sm:$0xff]
    %v837 = vld [vmem:[#allocation8 + $0x7e8] sm:$0xff]
    %v838 = vld [vmem:[#allocation8 + $0x7f0] sm:$0xff]
    %v839 = vld [vmem:[#allocation8 + $0x7f8] sm:$0xff]
    %v840 = vld [vmem:[#allocation8 + $0x800] sm:$0xff]
    %v841 = vld [vmem:[#allocation8 + $0x808] sm:$0xff]
    %v842 = vld [vmem:[#allocation8 + $0x810] sm:$0xff]
    %v843 = vld [vmem:[#allocation8 + $0x818] sm:$0xff]
    %v844 = vld [vmem:[#allocation8 + $0x820] sm:$0xff]
    %v845 = vld [vmem:[#allocation8 + $0x828] sm:$0xff]
    %v846 = vld [vmem:[#allocation8 + $0x830] sm:$0xff]
    %v847 = vld [vmem:[#allocation8 + $0x838] sm:$0xff]
    %v848 = vld [vmem:[#allocation8 + $0x840] sm:$0xff]
    %v849 = vld [vmem:[#allocation8 + $0x848] sm:$0xff]
    %v850 = vld [vmem:[#allocation8 + $0x850] sm:$0xff]
    %v851 = vld [vmem:[#allocation8 + $0x858] sm:$0xff]
    %v852 = vld [vmem:[#allocation8 + $0x860] sm:$0xff]
    %v853 = vld [vmem:[#allocation8 + $0x868] sm:$0xff]
    %v854 = vld [vmem:[#allocation8 + $0x870] sm:$0xff]
    %v855 = vld [vmem:[#allocation8 + $0x878] sm:$0xff]
    %v856 = vld [vmem:[#allocation8 + $0x880] sm:$0xff]
    %v857 = vld [vmem:[#allocation8 + $0x888] sm:$0xff]
    %v858 = vld [vmem:[#allocation8 + $0x890] sm:$0xff]
    %v859 = vld [vmem:[#allocation8 + $0x898] sm:$0xff]
    %v860 = vld [vmem:[#allocation8 + $0x8a0] sm:$0xff]
    %v861 = vld [vmem:[#allocation8 + $0x8a8] sm:$0xff]
    %v862 = vld [vmem:[#allocation8 + $0x8b0] sm:$0xff]
    %v863 = vld [vmem:[#allocation8 + $0x8b8] sm:$0xff]
    %v864 = vld [vmem:[#allocation8 + $0x8c0] sm:$0xff]
    %v865 = vld [vmem:[#allocation8 + $0x8c8] sm:$0xff]
    %v866 = vld [vmem:[#allocation8 + $0x8d0] sm:$0xff]
    %v867 = vld [vmem:[#allocation8 + $0x8d8] sm:$0xff]
    %v868 = vld [vmem:[#allocation8 + $0x8e0] sm:$0xff]
    %v869 = vld [vmem:[#allocation8 + $0x8e8] sm:$0xff]
    %v870 = vld [vmem:[#allocation8 + $0x8f0] sm:$0xff]
    %v871 = vld [vmem:[#allocation8 + $0x8f8] sm:$0xff]
    %v872 = vld [vmem:[#allocation8 + $0x900] sm:$0xff]
    %v873 = vld [vmem:[#allocation8 + $0x908] sm:$0xff]
    %v874 = vld [vmem:[#allocation8 + $0x910] sm:$0xff]
    %v875 = vld [vmem:[#allocation8 + $0x918] sm:$0xff]
    %v876 = vld [vmem:[#allocation8 + $0x920] sm:$0xff]
    %v877 = vld [vmem:[#allocation8 + $0x928] sm:$0xff]
    %v878 = vld [vmem:[#allocation8 + $0x930] sm:$0xff]
    %v879 = vld [vmem:[#allocation8 + $0x938] sm:$0xff]
    %v880 = vld [vmem:[#allocation8 + $0x940] sm:$0xff]
    %v881 = vld [vmem:[#allocation8 + $0x948] sm:$0xff]
    %v882 = vld [vmem:[#allocation8 + $0x950] sm:$0xff]
    %v883 = vld [vmem:[#allocation8 + $0x958] sm:$0xff]
    %v884 = vld [vmem:[#allocation8 + $0x960] sm:$0xff]
    %v885 = vld [vmem:[#allocation8 + $0x968] sm:$0xff]
    %v886 = vld [vmem:[#allocation8 + $0x970] sm:$0xff]
    %v887 = vld [vmem:[#allocation8 + $0x978] sm:$0xff]
    %v888 = vld [vmem:[#allocation10] sm:$0xf]
    %v890 = vlaneseq
    %v891 = vshrl.u32 %v890, 7
    %v892 = vsub.s32 0, %v891
    %v893 = vrot.slane %v888, %v892
    %v894 = vlaneseq
    %v895 = vshrl.u32 %v894, 7
    %v896 = vsub.s32 1, %v895
    %v897 = vrot.slane %v888, %v896
    %v898 = vlaneseq
    %v899 = vshrl.u32 %v898, 7
    %v900 = vsub.s32 2, %v899
    %v901 = vrot.slane %v888, %v900
    %v902 = vlaneseq
    %v903 = vshrl.u32 %v902, 7
    %v904 = vsub.s32 3, %v903
    %v905 = vrot.slane %v888, %v904
    %vm910 = vcmask 785408
    %v912 = vsel %vm910, %v583, 0
    %914 = vmatprep.subr.mxu0 %v585
    %915 = vmatpush1.msra.mxu0 %v584
    %916 = vmatprep.subr.mxu0 %v589
    %917 = vmatpush1.msra.mxu0 %v588
    %918 = vmatprep.subr.mxu0 %v593
    %919 = vmatpush1.msra.mxu0 %v592
    %920 = vmatprep.subr.mxu0 %v597
    %921 = vmatpush1.msra.mxu0 %v596
    %922 = vmatprep.subr.mxu0 %v601
    %923 = vmatpush1.msra.mxu0 %v600
    %924 = vmatprep.subr.mxu0 %v605
    %925 = vmatpush1.msra.mxu0 %v604
    %926 = vmatprep.subr.mxu0 %v609
    %927 = vmatpush1.msra.mxu0 %v608
    %928 = vmatprep.subr.mxu0 %v613
    %929 = vmatpush1.msra.mxu0 %v612
    %930 = vmatprep.subr.mxu0 %v617
    %931 = vmatpush1.msra.mxu0 %v616
    %932 = vmatprep.subr.mxu0 %v621
    %933 = vmatpush1.msra.mxu0 %v620
    %934 = vmatprep.subr.mxu0 %v625
    %935 = vmatpush1.msra.mxu0 %v624
    %936 = vmatprep.subr.mxu0 %v629
    %937 = vmatpush1.msra.mxu0 %v628
    %938 = vmatprep.subr.mxu0 %v633
    %939 = vmatpush1.msra.mxu0 %v632
    %940 = vmatprep.subr.mxu0 %v637
    %941 = vmatpush1.msra.mxu0 %v636
    %942 = vmatprep.subr.mxu0 %v641
    %943 = vmatpush1.msra.mxu0 %v640
    %944 = vmatprep.subr.mxu0 %v645
    %945 = vmatpush1.msra.mxu0 %v644
    %946 = vmatprep.subr.mxu0 %v649
    %947 = vmatpush1.msra.mxu0 %v648
    %948 = vmatprep.subr.mxu0 %v653
    %949 = vmatpush1.msra.mxu0 %v652
    %950 = vmatprep.subr.mxu0 %v657
    %951 = vmatpush1.msra.mxu0 %v656
    %952 = vmatprep.subr.mxu0 %v661
    %953 = vmatpush1.msra.mxu0 %v660
    %954 = vmatprep.subr.mxu0 %v665
    %955 = vmatpush1.msra.mxu0 %v664
    %956 = vmatprep.subr.mxu0 %v669
    %957 = vmatpush1.msra.mxu0 %v668
    %958 = vmatprep.subr.mxu0 %v673
    %959 = vmatpush1.msra.mxu0 %v672
    %960 = vmatprep.subr.mxu0 %v677
    %961 = vmatpush1.msra.mxu0 %v676
    %962 = vmatprep.subr.mxu0 %v681
    %963 = vmatpush1.msra.mxu0 %v680
    %964 = vmatprep.subr.mxu0 %v685
    %965 = vmatpush1.msra.mxu0 %v684
    %966 = vmatprep.subr.mxu0 %v689
    %967 = vmatpush1.msra.mxu0 %v688
    %968 = vmatprep.subr.mxu0 %v693
    %969 = vmatpush1.msra.mxu0 %v692
    %970 = vmatprep.subr.mxu0 %v697
    %971 = vmatpush1.msra.mxu0 %v696
    %972 = vmatprep.subr.mxu0 %v701
    %973 = vmatpush1.msra.mxu0 %v700
    %974 = vmatprep.subr.mxu0 %v705
    %975 = vmatpush1.msra.mxu0 %v704
    %976 = vmatprep.subr.mxu0 %v709
    %977 = vmatpush1.msra.mxu0 %v708
    %978 = vmatprep.mubr.f32.mxu0 %v562
    %979 = vmatmul.mubr.f32.gmra.mrb[0].mxu0 %v555
    %v980 = vpop.f32.mrb[0].mxu0
    %v981 = vadd.f32 %v893, %v980
    %v982 = vpop.f32.mrb[0].mxu0
    %v983 = vadd.f32 %v897, %v982
    %984 = vdwg.mxu0
    %985 = vmatprep.subr.mxu0 %v713
    %986 = vmatpush1.msra.mxu0 %v712
    %987 = vmatprep.subr.mxu0 %v717
    %988 = vmatpush1.msra.mxu0 %v716
    %989 = vmatprep.subr.mxu0 %v721
    %990 = vmatpush1.msra.mxu0 %v720
    %991 = vmatprep.subr.mxu0 %v725
    %992 = vmatpush1.msra.mxu0 %v724
    %993 = vmatprep.subr.mxu0 %v729
    %994 = vmatpush1.msra.mxu0 %v728
    %995 = vmatprep.subr.mxu0 %v733
    %996 = vmatpush1.msra.mxu0 %v732
    %997 = vmatprep.subr.mxu0 %v737
    %998 = vmatpush1.msra.mxu0 %v736
    %999 = vmatprep.subr.mxu0 %v741
    %1000 = vmatpush1.msra.mxu0 %v740
    %1001 = vmatprep.subr.mxu0 %v745
    %1002 = vmatpush1.msra.mxu0 %v744
    %1003 = vmatprep.subr.mxu0 %v749
    %1004 = vmatpush1.msra.mxu0 %v748
    %1005 = vmatprep.subr.mxu0 %v753
    %1006 = vmatpush1.msra.mxu0 %v752
    %1007 = vmatprep.subr.mxu0 %v757
    %1008 = vmatpush1.msra.mxu0 %v756
    %1009 = vmatprep.subr.mxu0 %v761
    %1010 = vmatpush1.msra.mxu0 %v760
    %1011 = vmatprep.subr.mxu0 %v765
    %1012 = vmatpush1.msra.mxu0 %v764
    %1013 = vmatprep.subr.mxu0 %v769
    %1014 = vmatpush1.msra.mxu0 %v768
    %1015 = vmatprep.subr.mxu0 %v773
    %1016 = vmatpush1.msra.mxu0 %v772
    %1017 = vmatprep.subr.mxu0 %v777
    %1018 = vmatpush1.msra.mxu0 %v776
    %1019 = vmatprep.subr.mxu0 %v781
    %1020 = vmatpush1.msra.mxu0 %v780
    %1021 = vmatprep.subr.mxu0 %v785
    %1022 = vmatpush1.msra.mxu0 %v784
    %1023 = vmatprep.subr.mxu0 %v789
    %1024 = vmatpush1.msra.mxu0 %v788
    %1025 = vmatprep.subr.mxu0 %v793
    %1026 = vmatpush1.msra.mxu0 %v792
    %1027 = vmatprep.subr.mxu0 %v797
    %1028 = vmatpush1.msra.mxu0 %v796
    %1029 = vmatprep.subr.mxu0 %v801
    %1030 = vmatpush1.msra.mxu0 %v800
    %1031 = vmatprep.subr.mxu0 %v805
    %1032 = vmatpush1.msra.mxu0 %v804
    %1033 = vmatprep.subr.mxu0 %v809
    %1034 = vmatpush1.msra.mxu0 %v808
    %1035 = vmatprep.subr.mxu0 %v813
    %1036 = vmatpush1.msra.mxu0 %v812
    %1037 = vmatprep.subr.mxu0 %v817
    %1038 = vmatpush1.msra.mxu0 %v816
    %1039 = vmatprep.subr.mxu0 %v821
    %1040 = vmatpush1.msra.mxu0 %v820
    %1041 = vmatprep.subr.mxu0 %v825
    %1042 = vmatpush1.msra.mxu0 %v824
    %1043 = vmatprep.subr.mxu0 %v829
    %1044 = vmatpush1.msra.mxu0 %v828
    %1045 = vmatprep.subr.mxu0 %v833
    %1046 = vmatpush1.msra.mxu0 %v832
    %1047 = vmatprep.subr.mxu0 %v837
    %1048 = vmatpush1.msra.mxu0 %v836
    %1049 = vmatprep.mubr.f32.mxu0 %v576
    %1050 = vmatmul.mubr.f32.gmra.mrb[0].mxu0 %v569
    %v1051 = vpop.f32.mrb[0].mxu0
    %v1052 = vadd.f32 %v981, %v1051
    %v1053 = vpop.f32.mrb[0].mxu0
    %v1054 = vadd.f32 %v983, %v1053
    %1055 = vdwg.mxu0
    %1056 = vmatprep.subr.mxu0 %v841
    %1057 = vmatpush1.msra.mxu0 %v840
    %1058 = vmatprep.subr.mxu0 %v845
    %1059 = vmatpush1.msra.mxu0 %v844
    %1060 = vmatprep.subr.mxu0 %v849
    %1061 = vmatpush1.msra.mxu0 %v848
    %1062 = vmatprep.subr.mxu0 %v853
    %1063 = vmatpush1.msra.mxu0 %v852
    %1064 = vmatprep.subr.mxu0 %v857
    %1065 = vmatpush1.msra.mxu0 %v856
    %1066 = vmatprep.subr.mxu0 %v861
    %1067 = vmatpush1.msra.mxu0 %v860
    %1068 = vmatprep.subr.mxu0 %v865
    %1069 = vmatpush1.msra.mxu0 %v864
    %1070 = vmatprep.subr.mxu0 %v869
    %1071 = vmatpush1.msra.mxu0 %v868
    %1072 = vmatprep.subr.mxu0 %v873
    %1073 = vmatpush1.msra.mxu0 %v872
    %1074 = vmatprep.subr.mxu0 %v877
    %1075 = vmatpush1.msra.mxu0 %v876
    %1076 = vmatprep.subr.mxu0 %v881
    %1077 = vmatpush1.msra.mxu0 %v880
    %1078 = vmatprep.subr.mxu0 %v885
    %1079 = vmatpush1.msra.mxu0 %v884
    %1080 = vmatprep.subr.mxu0 0.0
    %1081 = vmatpush1.msra.mxu0 0.0
    %1082 = vmatprep.subr.mxu0 0.0
    %1083 = vmatpush1.msra.mxu0 0.0
    %1084 = vmatprep.subr.mxu0 0.0
    %1085 = vmatpush1.msra.mxu0 0.0
    %1086 = vmatprep.subr.mxu0 0.0
    %1087 = vmatpush1.msra.mxu0 0.0
    %1088 = vmatprep.subr.mxu0 0.0
    %1089 = vmatpush1.msra.mxu0 0.0
    %1090 = vmatprep.subr.mxu0 0.0
    %1091 = vmatpush1.msra.mxu0 0.0
    %1092 = vmatprep.subr.mxu0 0.0
    %1093 = vmatpush1.msra.mxu0 0.0
    %1094 = vmatprep.subr.mxu0 0.0
    %1095 = vmatpush1.msra.mxu0 0.0
    %1096 = vmatprep.subr.mxu0 0.0
    %1097 = vmatpush1.msra.mxu0 0.0
    %1098 = vmatprep.subr.mxu0 0.0
    %1099 = vmatpush1.msra.mxu0 0.0
    %1100 = vmatprep.subr.mxu0 0.0
    %1101 = vmatpush1.msra.mxu0 0.0
    %1102 = vmatprep.subr.mxu0 0.0
    %1103 = vmatpush1.msra.mxu0 0.0
    %1104 = vmatprep.subr.mxu0 0.0
    %1105 = vmatpush1.msra.mxu0 0.0
    %1106 = vmatprep.subr.mxu0 0.0
    %1107 = vmatpush1.msra.mxu0 0.0
    %1108 = vmatprep.subr.mxu0 0.0
    %1109 = vmatpush1.msra.mxu0 0.0
    %1110 = vmatprep.subr.mxu0 0.0
    %1111 = vmatpush1.msra.mxu0 0.0
    %1112 = vmatprep.subr.mxu0 0.0
    %1113 = vmatpush1.msra.mxu0 0.0
    %1114 = vmatprep.subr.mxu0 0.0
    %1115 = vmatpush1.msra.mxu0 0.0
    %1116 = vmatprep.subr.mxu0 0.0
    %1117 = vmatpush1.msra.mxu0 0.0
    %1118 = vmatprep.subr.mxu0 0.0
    %1119 = vmatpush1.msra.mxu0 0.0
    %1120 = vmatprep.mubr.f32.mxu0 0.0
    %1121 = vmatmul.mubr.f32.gmra.mrb[0].mxu0 %v912
    %v1122 = vpop.f32.mrb[0].mxu0
    %v1123 = vadd.f32 %v1052, %v1122
    %v1124 = vpop.f32.mrb[0].mxu0
    %v1125 = vadd.f32 %v1054, %v1124
    %1126 = vdwg.mxu0
    %1127 = vmatprep.subr.mxu0 %v587
    %1128 = vmatpush1.msra.mxu0 %v586
    %1129 = vmatprep.subr.mxu0 %v591
    %1130 = vmatpush1.msra.mxu0 %v590
    %1131 = vmatprep.subr.mxu0 %v595
    %1132 = vmatpush1.msra.mxu0 %v594
    %1133 = vmatprep.subr.mxu0 %v599
    %1134 = vmatpush1.msra.mxu0 %v598
    %1135 = vmatprep.subr.mxu0 %v603
    %1136 = vmatpush1.msra.mxu0 %v602
    %1137 = vmatprep.subr.mxu0 %v607
    %1138 = vmatpush1.msra.mxu0 %v606
    %1139 = vmatprep.subr.mxu0 %v611
    %1140 = vmatpush1.msra.mxu0 %v610
    %1141 = vmatprep.subr.mxu0 %v615
    %1142 = vmatpush1.msra.mxu0 %v614
    %1143 = vmatprep.subr.mxu0 %v619
    %1144 = vmatpush1.msra.mxu0 %v618
    %1145 = vmatprep.subr.mxu0 %v623
    %1146 = vmatpush1.msra.mxu0 %v622
    %1147 = vmatprep.subr.mxu0 %v627
    %1148 = vmatpush1.msra.mxu0 %v626
    %1149 = vmatprep.subr.mxu0 %v631
    %1150 = vmatpush1.msra.mxu0 %v630
    %1151 = vmatprep.subr.mxu0 %v635
    %1152 = vmatpush1.msra.mxu0 %v634
    %1153 = vmatprep.subr.mxu0 %v639
    %1154 = vmatpush1.msra.mxu0 %v638
    %1155 = vmatprep.subr.mxu0 %v643
    %1156 = vmatpush1.msra.mxu0 %v642
    %1157 = vmatprep.subr.mxu0 %v647
    %1158 = vmatpush1.msra.mxu0 %v646
    %1159 = vmatprep.subr.mxu0 %v651
    %1160 = vmatpush1.msra.mxu0 %v650
    %1161 = vmatprep.subr.mxu0 %v655
    %1162 = vmatpush1.msra.mxu0 %v654
    %1163 = vmatprep.subr.mxu0 %v659
    %1164 = vmatpush1.msra.mxu0 %v658
    %1165 = vmatprep.subr.mxu0 %v663
    %1166 = vmatpush1.msra.mxu0 %v662
    %1167 = vmatprep.subr.mxu0 %v667
    %1168 = vmatpush1.msra.mxu0 %v666
    %1169 = vmatprep.subr.mxu0 %v671
    %1170 = vmatpush1.msra.mxu0 %v670
    %1171 = vmatprep.subr.mxu0 %v675
    %1172 = vmatpush1.msra.mxu0 %v674
    %1173 = vmatprep.subr.mxu0 %v679
    %1174 = vmatpush1.msra.mxu0 %v678
    %1175 = vmatprep.subr.mxu0 %v683
    %1176 = vmatpush1.msra.mxu0 %v682
    %1177 = vmatprep.subr.mxu0 %v687
    %1178 = vmatpush1.msra.mxu0 %v686
    %1179 = vmatprep.subr.mxu0 %v691
    %1180 = vmatpush1.msra.mxu0 %v690
    %1181 = vmatprep.subr.mxu0 %v695
    %1182 = vmatpush1.msra.mxu0 %v694
    %1183 = vmatprep.subr.mxu0 %v699
    %1184 = vmatpush1.msra.mxu0 %v698
    %1185 = vmatprep.subr.mxu0 %v703
    %1186 = vmatpush1.msra.mxu0 %v702
    %1187 = vmatprep.subr.mxu0 %v707
    %1188 = vmatpush1.msra.mxu0 %v706
    %1189 = vmatprep.subr.mxu0 %v711
    %1190 = vmatpush1.msra.mxu0 %v710
    %1191 = vmatprep.mubr.f32.mxu0 %v562
    %1192 = vmatmul.mubr.f32.gmra.mrb[0].mxu0 %v555
    %v1193 = vpop.f32.mrb[0].mxu0
    %v1194 = vadd.f32 %v901, %v1193
    %v1195 = vpop.f32.mrb[0].mxu0
    %v1196 = vadd.f32 %v905, %v1195
    %1197 = vdwg.mxu0
    %1198 = vmatprep.subr.mxu0 %v715
    %1199 = vmatpush1.msra.mxu0 %v714
    %1200 = vmatprep.subr.mxu0 %v719
    %1201 = vmatpush1.msra.mxu0 %v718
    %1202 = vmatprep.subr.mxu0 %v723
    %1203 = vmatpush1.msra.mxu0 %v722
    %1204 = vmatprep.subr.mxu0 %v727
    %1205 = vmatpush1.msra.mxu0 %v726
    %1206 = vmatprep.subr.mxu0 %v731
    %1207 = vmatpush1.msra.mxu0 %v730
    %1208 = vmatprep.subr.mxu0 %v735
    %1209 = vmatpush1.msra.mxu0 %v734
    %1210 = vmatprep.subr.mxu0 %v739
    %1211 = vmatpush1.msra.mxu0 %v738
    %1212 = vmatprep.subr.mxu0 %v743
    %1213 = vmatpush1.msra.mxu0 %v742
    %1214 = vmatprep.subr.mxu0 %v747
    %1215 = vmatpush1.msra.mxu0 %v746
    %1216 = vmatprep.subr.mxu0 %v751
    %1217 = vmatpush1.msra.mxu0 %v750
    %1218 = vmatprep.subr.mxu0 %v755
    %1219 = vmatpush1.msra.mxu0 %v754
    %1220 = vmatprep.subr.mxu0 %v759
    %1221 = vmatpush1.msra.mxu0 %v758
    %1222 = vmatprep.subr.mxu0 %v763
    %1223 = vmatpush1.msra.mxu0 %v762
    %1224 = vmatprep.subr.mxu0 %v767
    %1225 = vmatpush1.msra.mxu0 %v766
    %1226 = vmatprep.subr.mxu0 %v771
    %1227 = vmatpush1.msra.mxu0 %v770
    %1228 = vmatprep.subr.mxu0 %v775
    %1229 = vmatpush1.msra.mxu0 %v774
    %1230 = vmatprep.subr.mxu0 %v779
    %1231 = vmatpush1.msra.mxu0 %v778
    %1232 = vmatprep.subr.mxu0 %v783
    %1233 = vmatpush1.msra.mxu0 %v782
    %1234 = vmatprep.subr.mxu0 %v787
    %1235 = vmatpush1.msra.mxu0 %v786
    %1236 = vmatprep.subr.mxu0 %v791
    %1237 = vmatpush1.msra.mxu0 %v790
    %1238 = vmatprep.subr.mxu0 %v795
    %1239 = vmatpush1.msra.mxu0 %v794
    %1240 = vmatprep.subr.mxu0 %v799
    %1241 = vmatpush1.msra.mxu0 %v798
    %1242 = vmatprep.subr.mxu0 %v803
    %1243 = vmatpush1.msra.mxu0 %v802
    %1244 = vmatprep.subr.mxu0 %v807
    %1245 = vmatpush1.msra.mxu0 %v806
    %1246 = vmatprep.subr.mxu0 %v811
    %1247 = vmatpush1.msra.mxu0 %v810
    %1248 = vmatprep.subr.mxu0 %v815
    %1249 = vmatpush1.msra.mxu0 %v814
    %1250 = vmatprep.subr.mxu0 %v819
    %1251 = vmatpush1.msra.mxu0 %v818
    %1252 = vmatprep.subr.mxu0 %v823
    %1253 = vmatpush1.msra.mxu0 %v822
    %1254 = vmatprep.subr.mxu0 %v827
    %1255 = vmatpush1.msra.mxu0 %v826
    %1256 = vmatprep.subr.mxu0 %v831
    %1257 = vmatpush1.msra.mxu0 %v830
    %1258 = vmatprep.subr.mxu0 %v835
    %1259 = vmatpush1.msra.mxu0 %v834
    %1260 = vmatprep.subr.mxu0 %v839
    %1261 = vmatpush1.msra.mxu0 %v838
    %1262 = vmatprep.mubr.f32.mxu0 %v576
    %1263 = vmatmul.mubr.f32.gmra.mrb[0].mxu0 %v569
    %v1264 = vpop.f32.mrb[0].mxu0
    %v1265 = vadd.f32 %v1194, %v1264
    %v1266 = vpop.f32.mrb[0].mxu0
    %v1267 = vadd.f32 %v1196, %v1266
    %1268 = vdwg.mxu0
    %1269 = vmatprep.subr.mxu0 %v843
    %1270 = vmatpush1.msra.mxu0 %v842
    %1271 = vmatprep.subr.mxu0 %v847
    %1272 = vmatpush1.msra.mxu0 %v846
    %1273 = vmatprep.subr.mxu0 %v851
    %1274 = vmatpush1.msra.mxu0 %v850
    %1275 = vmatprep.subr.mxu0 %v855
    %1276 = vmatpush1.msra.mxu0 %v854
    %1277 = vmatprep.subr.mxu0 %v859
    %1278 = vmatpush1.msra.mxu0 %v858
    %1279 = vmatprep.subr.mxu0 %v863
    %1280 = vmatpush1.msra.mxu0 %v862
    %1281 = vmatprep.subr.mxu0 %v867
    %1282 = vmatpush1.msra.mxu0 %v866
    %1283 = vmatprep.subr.mxu0 %v871
    %1284 = vmatpush1.msra.mxu0 %v870
    %1285 = vmatprep.subr.mxu0 %v875
    %1286 = vmatpush1.msra.mxu0 %v874
    %1287 = vmatprep.subr.mxu0 %v879
    %1288 = vmatpush1.msra.mxu0 %v878
    %1289 = vmatprep.subr.mxu0 %v883
    %1290 = vmatpush1.msra.mxu0 %v882
    %1291 = vmatprep.subr.mxu0 %v887
    %1292 = vmatpush1.msra.mxu0 %v886
    %1293 = vmatprep.subr.mxu0 0.0
    %1294 = vmatpush1.msra.mxu0 0.0
    %1295 = vmatprep.subr.mxu0 0.0
    %1296 = vmatpush1.msra.mxu0 0.0
    %1297 = vmatprep.subr.mxu0 0.0
    %1298 = vmatpush1.msra.mxu0 0.0
    %1299 = vmatprep.subr.mxu0 0.0
    %1300 = vmatpush1.msra.mxu0 0.0
    %1301 = vmatprep.subr.mxu0 0.0
    %1302 = vmatpush1.msra.mxu0 0.0
    %1303 = vmatprep.subr.mxu0 0.0
    %1304 = vmatpush1.msra.mxu0 0.0
    %1305 = vmatprep.subr.mxu0 0.0
    %1306 = vmatpush1.msra.mxu0 0.0
    %1307 = vmatprep.subr.mxu0 0.0
    %1308 = vmatpush1.msra.mxu0 0.0
    %1309 = vmatprep.subr.mxu0 0.0
    %1310 = vmatpush1.msra.mxu0 0.0
    %1311 = vmatprep.subr.mxu0 0.0
    %1312 = vmatpush1.msra.mxu0 0.0
    %1313 = vmatprep.subr.mxu0 0.0
    %1314 = vmatpush1.msra.mxu0 0.0
    %1315 = vmatprep.subr.mxu0 0.0
    %1316 = vmatpush1.msra.mxu0 0.0
    %1317 = vmatprep.subr.mxu0 0.0
    %1318 = vmatpush1.msra.mxu0 0.0
    %1319 = vmatprep.subr.mxu0 0.0
    %1320 = vmatpush1.msra.mxu0 0.0
    %1321 = vmatprep.subr.mxu0 0.0
    %1322 = vmatpush1.msra.mxu0 0.0
    %1323 = vmatprep.subr.mxu0 0.0
    %1324 = vmatpush1.msra.mxu0 0.0
    %1325 = vmatprep.subr.mxu0 0.0
    %1326 = vmatpush1.msra.mxu0 0.0
    %1327 = vmatprep.subr.mxu0 0.0
    %1328 = vmatpush1.msra.mxu0 0.0
    %1329 = vmatprep.subr.mxu0 0.0
    %1330 = vmatpush1.msra.mxu0 0.0
    %1331 = vmatprep.subr.mxu0 0.0
    %1332 = vmatpush1.msra.mxu0 0.0
    %1333 = vmatprep.mubr.f32.mxu0 0.0
    %1334 = vmatmul.mubr.f32.gmra.mrb[0].mxu0 %v912
    %v1335 = vpop.f32.mrb[0].mxu0
    %v1336 = vadd.f32 %v1265, %v1335
    %v1337 = vpop.f32.mrb[0].mxu0
    %v1338 = vadd.f32 %v1267, %v1337
    %1339 = vdwg.mxu0
    %v1344 = vcombine.low %v1123, %v1125
    %v1345 = vcombine.low %v1336, %v1338
    %v1347 = vunpack.c.l.s4 1983009808
    %v1348 = vunpack.c.0.s8 %v1347
    %v1349 = vlaneseq
    %v1350 = vshrl.u32 %v1349, 7
    %v1351 = vsub.s32 %v1348, %v1350
    %v1352 = vrot.slane %v1344, %v1351
    %v1354 = vunpack.c.l.s4 1983009808
    %v1355 = vunpack.c.0.s8 %v1354
    %v1356 = vlaneseq
    %v1357 = vshrl.u32 %v1356, 7
    %v1358 = vsub.s32 %v1355, %v1357
    %v1359 = vrot.slane %v1345, %v1358
    %v1360 = vcombine.low %v1352, %v1359
    %1362 = vst [vmem:[#allocation11] sm:$0xff] %v1360
    // Predicated region
    $region42: #{tpu_custom_call.1} parent=1 // pred_check
      _
    $region43: #{tpu_custom_call.1} parent=1 // pred_check_branch
      %1364 = sbr.rel (0) target = $region45
    $region44: #{tpu_custom_call.1} parent=1 // pred_region
      %s1366 = ssub.s32 128, 128
      %1367 = vsyncadd [#allocation4], %s1366
      %s1369 = sshll.u32 [#allocation11], 4
      %s1370 = int_to_ptr.vmem [resolvable:$true] %s1369
      %1372 = dma.vmem_to_hbm [thread:$0]  %s1370, 128, %s5, [#allocation4]
    $region45: #{tpu_custom_call.1} parent=1 // pred_fallthru
      _
    // Predicated region
    $region46: #{tpu_custom_call.1} parent=1 // pred_check
      _
    $region47: #{tpu_custom_call.1} parent=1 // pred_check_branch
      %1374 = sbr.rel (0) target = $region49
    $region48: #{tpu_custom_call.1} parent=1 // pred_region
      %1375 = dma.done [#allocation4], 128
    $region49: #{tpu_custom_call.1} parent=1 // pred_fallthru
      _
    %1376 = vsyncpa [#allocation3], 1
    %1377 = vsyncpa [#allocation6], 1
    %1378 = vsyncpa [#allocation9], 1
    %1379 = vsyncpa [#allocation4], 1

</llo_original>
